<compile_context>
chip_gen: v7x
topology: tpu7x:2x2x1
jax: 0.10.0
libtpu: 0.0.40
codegen_flags: <defaults>
</compile_context>

<pallas_src>
import math

import jax
import jax.numpy as jnp
from jax.experimental import pallas as pl
from jax.experimental.pallas import tpu as pltpu


def _round_up(x, n):
    return ((x + n - 1) // n) * n


def _tpu_vmem_and_chip():
    """(physical VMEM bytes per core, lowercase chip-version string).

    Safe fallbacks if the query is unavailable; 64 MiB is the smallest VMEM across v5e/v6e/v7x,
    so the conservative default always fits."""
    cap = 64 << 20
    chip = ""
    try:
        info = pltpu.get_tpu_info()
        cap = int(getattr(info, "vmem_capacity_bytes", cap))
        chip = str(getattr(info, "chip_version", "")).lower()
    except Exception:
        pass
    return cap, chip


def _fit_row_tile(M, want):
    # bf16 sublane packing: keep tm a multiple of 16 (also covers the f32 8-row requirement).
    return max(16, _round_up(min(want, _round_up(M, 16)), 16))


def _fit_ffn_tile(ffn, want):
    if ffn % 128 != 0:
        return ffn  # full-extent block is always layout-legal
    t = min((want // 128) * 128, ffn)
    while t >= 128:
        if ffn % t == 0:
            return t
        t -= 128
    return ffn


def _budget_bytes(tm, tf, hidden, out_itemsize):
    """Approximate VMEM working set: double-buffered x / w13 / w2 / out tiles, the f32
    accumulator scratch and the f32 h / h1 / h3 / silu*h3 intermediates (operands are bf16)."""
    return (4 * tm * hidden                 # x: 2 buffers, bf16
            + 8 * hidden * tf               # w13 [hidden, 2*tf]: 2 buffers, bf16
            + 4 * hidden * tf               # w2  [tf, hidden]:  2 buffers, bf16
            + 2 * tm * hidden * out_itemsize
            + 4 * tm * hidden               # f32 accumulator scratch
            + 16 * tm * tf)                 # f32 intermediates


def _select_tiles(M, hidden, ffn, out_itemsize, tm_req, tf_req, cap_bytes, chip):
    """Pick (tm, tf) per chip generation, stepping down until the double-buffered working set
    (plus headroom) fits the chip's physical VMEM."""
    headroom = 12 << 20
    prefs = []
    if "v6" in chip:
        prefs.append((1024, 512))   # v6e is HBM-bound at tm=512: double the row-tile weight reuse
    elif "v5" in chip:
        prefs.append((512, 512))    # v5e is already MXU-bound at tm=512; don't pay extra VMEM
    elif cap_bytes >= (96 << 20):
        prefs.append((1024, 512))   # large-VMEM chip, unknown name
    prefs += [(512, 512), (512, 256), (256, 256), (256, 128),
              (128, 128), (64, 128), (32, 128), (16, 128)]
    chosen = None
    for tm_c, tf_c in prefs:
        tm_e = _fit_row_tile(M, tm_req if tm_req is not None else tm_c)
        tf_e = tf_req if tf_req is not None else _fit_ffn_tile(ffn, tf_c)
        chosen = (tm_e, tf_e)
        if _budget_bytes(tm_e, tf_e, hidden, out_itemsize) + headroom <= cap_bytes:
            break
    return chosen


def _gmm_swiglu_kernel(group_ids_ref, x_tile_ids_ref, out_tile_ids_ref, num_real_ref,  # SMEM prefetch
                       x_ref, w13_ref, w2_ref,                                          # VMEM inputs
                       out_ref,                                                         # VMEM output [tm, hidden]
                       acc_ref):                                                        # f32 scratch [tm, hidden]
    t = pl.program_id(0)          # (row-tile, expert) visit — "parallel"
    f = pl.program_id(1)          # ffn tile (w2 reduction axis, last, "arbitrary")
    nf = pl.num_programs(1)

    @pl.when(t < num_real_ref[0])                # skip filler visits entirely (no MXU work)
    def _visit():
        @pl.when(f == 0)
        def _init():
            acc_ref[...] = jnp.zeros_like(acc_ref)

        x = x_ref[...]            # [tm, hidden]      bf16
        w13 = w13_ref[0]          # [hidden, 2*tf]    bf16  ([w1_tile | w3_tile] interleaved)
        w2 = w2_ref[0]            # [tf, hidden]      bf16
        tf = w2.shape[0]

        h = jnp.dot(x, w13, preferred_element_type=jnp.float32)     # one MXU pass -> [tm, 2*tf] f32
        h1 = h[:, :tf]
        h3 = h[:, tf:]
        s = (h1 * jax.nn.sigmoid(h1)) * h3                           # silu(h1) * h3, f32 VPU/EUP
        acc_ref[...] += jnp.dot(s.astype(w2.dtype), w2,
                                preferred_element_type=jnp.float32)  # [tm, hidden] f32 accumulate

        @pl.when(f == nf - 1)
        def _store():
            # Per-expert tm-aligned padding guarantees this whole tile belongs to one expert:
            # pure unmasked lane-dense store, no read-modify-write.
            out_ref[...] = acc_ref[...].astype(out_ref.dtype)


def mixtral_gmm_top2_mlp(hidden_states, top_ks, w1, w2, w3, *, tm=None, tf=None,
                         compute_dtype=jnp.bfloat16):
    """hidden_states: [m, hidden]; top_ks: [m, k] int32; w1/w3: [E, hidden, ffn]; w2: [E, ffn, hidden].
    Returns [m, k, hidden] in hidden_states.dtype (bf16 MXU operands, f32 accumulation)."""
    m, hidden = hidden_states.shape
    k = top_ks.shape[1]
    num_experts, _, ffn = w1.shape
    assert w2.shape == (num_experts, ffn, hidden)
    assert w3.shape == (num_experts, hidden, ffn)
    out_dtype = hidden_states.dtype
    osz = jnp.dtype(out_dtype).itemsize
    isz = jnp.dtype(compute_dtype).itemsize

    M = m * k
    if tf is not None:
        assert ffn % tf == 0 and (tf % 128 == 0 or tf == ffn), tf
    cap_bytes, chip = _tpu_vmem_and_chip()
    tm, tf = _select_tiles(M, hidden, ffn, osz, tm, tf, cap_bytes, chip)
    nf = ffn // tf

    num_m_tiles_ub = pl.cdiv(M, tm) + num_experts - 1   # static upper bound on per-expert-padded tiles
    trash_tile = num_m_tiles_ub                          # filler visits write here; never read back
    m_pad = num_m_tiles_ub * tm
    out_rows = (num_m_tiles_ub + 1) * tm

    # --- routing (mirrors torch: argsort(top_ks.flatten()) + row gather); each expert's group is
    #     padded to a multiple of tm so no row tile straddles two experts ---
    top_flat = top_ks.reshape(-1).astype(jnp.int32)                  # [M]
    order = jnp.argsort(top_flat)                                    # [M] sorted pos -> replica idx
    experts_sorted = jnp.take(top_flat, order)                       # non-decreasing expert ids
    token_idx = order // k                                           # replica r comes from token r // k

    group_sizes = jnp.bincount(top_flat, length=num_experts).astype(jnp.int32)
    group_starts = (jnp.cumsum(group_sizes) - group_sizes).astype(jnp.int32)
    tiles_per_group = ((group_sizes + tm - 1) // tm).astype(jnp.int32)
    cum_tiles = jnp.cumsum(tiles_per_group).astype(jnp.int32)
    num_real_tiles = cum_tiles[-1]
    padded_starts = (jnp.cumsum(tiles_per_group * tm) - tiles_per_group * tm).astype(jnp.int32)

    s_idx = jnp.arange(M, dtype=jnp.int32)
    dest = padded_starts[experts_sorted] + (s_idx - group_starts[experts_sorted])   # [M], increasing

    x_bf = hidden_states.astype(compute_dtype)                       # cast before gather: half the HBM traffic
    x_sorted = jnp.take(x_bf, token_idx, axis=0)                     # [M, hidden]
    x_padded = jnp.zeros((m_pad, hidden), compute_dtype).at[dest].set(
        x_sorted, indices_are_sorted=True, unique_indices=True)
    inv = jnp.zeros((M,), jnp.int32).at[order].set(dest, unique_indices=True)  # replica r -> padded row

    # --- visit metadata (scalar-prefetched into SMEM) ---
    t_arr = jnp.arange(num_m_tiles_ub, dtype=jnp.int32)
    gid = jnp.minimum(jnp.searchsorted(cum_tiles, t_arr, side="right"),
                      num_experts - 1).astype(jnp.int32)
    last = jnp.maximum(num_real_tiles - 1, 0).astype(jnp.int32)
    is_real = t_arr < num_real_tiles
    group_ids = jnp.where(is_real, gid, gid[last]).astype(jnp.int32)      # fillers repeat last real (DMA elided)
    x_tile_ids = jnp.where(is_real, t_arr, last).astype(jnp.int32)
    out_tile_ids = jnp.where(is_real, t_arr, jnp.int32(trash_tile)).astype(jnp.int32)
    num_real = num_real_tiles.reshape(1).astype(jnp.int32)

    # --- weights: bf16, w1/w3 interleaved per ffn tile -> one weight DMA stream / one MXU pass ---
    # TODO(synk): pre-pack w13 once at weight-load time; here it is re-packed each forward call.
    w13 = jnp.concatenate(
        [w1.astype(compute_dtype).reshape(num_experts, hidden, nf, tf),
         w3.astype(compute_dtype).reshape(num_experts, hidden, nf, tf)],
        axis=-1).reshape(num_experts, hidden, 2 * ffn)
    w2c = w2.astype(compute_dtype)

    budget = _budget_bytes(tm, tf, hidden, osz)
    vmem_limit = int(max(32 << 20, min(budget + (12 << 20), cap_bytes - (1 << 20))))

    cost = pl.CostEstimate(
        flops=6 * M * hidden * ffn,
        transcendentals=M * ffn,
        bytes_accessed=M * hidden * (2 * isz + osz) + 3 * num_experts * hidden * ffn * isz)

    def _run(dim_sem):
        return pl.pallas_call(
            _gmm_swiglu_kernel,
            out_shape=jax.ShapeDtypeStruct((out_rows, hidden), out_dtype),
            grid_spec=pltpu.PrefetchScalarGridSpec(
                num_scalar_prefetch=4,
                grid=(num_m_tiles_ub, nf),
                in_specs=[
                    pl.BlockSpec((tm, hidden), lambda t, f, g, xt, ot, nr: (xt[t], 0)),
                    pl.BlockSpec((1, hidden, 2 * tf), lambda t, f, g, xt, ot, nr: (g[t], 0, f)),
                    pl.BlockSpec((1, tf, hidden), lambda t, f, g, xt, ot, nr: (g[t], f, 0)),
                ],
                out_specs=pl.BlockSpec((tm, hidden), lambda t, f, g, xt, ot, nr: (ot[t], 0)),
                scratch_shapes=[pltpu.VMEM((tm, hidden), jnp.float32)],
            ),
            compiler_params=pltpu.CompilerParams(
                dimension_semantics=dim_sem,
                vmem_limit_bytes=vmem_limit,
            ),
            cost_estimate=cost,
        )(group_ids, x_tile_ids, out_tile_ids, num_real, x_padded, w13, w2c)

    try:
        # Real visits own disjoint output tiles and fillers only touch the trash tile, so the
        # visit axis is safe to shard across v7x's 2 TensorCores.
        out_padded = _run(("parallel", "arbitrary"))
    except Exception:
        # TODO(synk): fallback if this Pallas build rejects a parallel dim with prefetch-driven maps.
        out_padded = _run(("arbitrary", "arbitrary"))

    out = jnp.take(out_padded, inv, axis=0)          # un-sort; padded/trash rows are never gathered
    return out.reshape(m, k, hidden)


def _kaiming_uniform(key, shape, a=math.sqrt(5)):
    # torch kaiming_uniform_ on a 3-D tensor [E, d_in, d_out]: fan_in = shape[1] * prod(shape[2:])
    fan_in = shape[1] * math.prod(shape[2:])
    gain = math.sqrt(2.0 / (1.0 + a * a))
    bound = math.sqrt(3.0) * gain / math.sqrt(fan_in)
    return jax.random.uniform(key, shape, jnp.float32, -bound, bound)


def _reference(hidden_states, top_ks, w1, w2, w3):
    # Plain-JAX reference mirroring Gmm._eager_gmm (per-replica expert SwiGLU MLP) with the same
    # dtype policy as the kernel: bf16 matmul operands, f32 accumulation, f32 elementwise.
    m, hidden = hidden_states.shape
    k = top_ks.shape[1]
    bf = jnp.bfloat16
    x_rep = jnp.repeat(hidden_states, k, axis=0).astype(bf)          # [M, H]
    eids = top_ks.reshape(-1)                                        # [M]
    w1g = w1[eids].astype(bf)
    w3g = w3[eids].astype(bf)
    w2g = w2[eids].astype(bf)
    h1 = jnp.einsum("mh,mhf->mf", x_rep, w1g, preferred_element_type=jnp.float32)
    h3 = jnp.einsum("mh,mhf->mf", x_rep, w3g, preferred_element_type=jnp.float32)
    s = (h1 * jax.nn.sigmoid(h1)) * h3
    y = jnp.einsum("mf,mfh->mh", s.astype(bf), w2g, preferred_element_type=jnp.float32)
    return y.reshape(m, k, hidden)


if __name__ == "__main__":
    # Small, Mixtral-shaped problem. num_experts > number of row tiles so the filler-visit
    # (pl.when-skipped) path and empty-expert handling are exercised.
    m = 8              # tokens
    k = 2              # top-2 routing
    hidden = 128       # hidden_size
    ffn = 256          # intermediate_size
    num_experts = 8    # num_local_experts

    key = jax.random.PRNGKey(0)
    kx, kt, k1, k2, k3 = jax.random.split(key, 5)

    hidden_states = jax.random.normal(kx, (m, hidden), jnp.float32)
    top_ks = jax.random.randint(kt, (m, k), 0, num_experts, jnp.int32)

    w1 = _kaiming_uniform(k1, (num_experts, hidden, ffn))
    w2 = _kaiming_uniform(k2, (num_experts, ffn, hidden))
    w3 = _kaiming_uniform(k3, (num_experts, hidden, ffn))

    ref = _reference(hidden_states, top_ks, w1, w2, w3)

    # 1) Small explicit tiles: multi-expert visits, tiled-ffn accumulation, per-expert padding
    #    and filler skipping are all exercised.
    out = jax.block_until_ready(
        mixtral_gmm_top2_mlp(hidden_states, top_ks, w1, w2, w3, tm=16, tf=128))
    assert out.shape == (m, k, hidden), out.shape
    err = float(jnp.max(jnp.abs(out.astype(jnp.float32) - ref)))
    assert jnp.allclose(out.astype(jnp.float32), ref, rtol=2e-2, atol=2e-5), err

    # 2) Default chip-derived tiles (clamped to this tiny problem) — exercises the VMEM/tile
    #    selection path.
    out2 = jax.block_until_ready(mixtral_gmm_top2_mlp(hidden_states, top_ks, w1, w2, w3))
    err2 = float(jnp.max(jnp.abs(out2.astype(jnp.float32) - ref)))
    assert jnp.allclose(out2.astype(jnp.float32), ref, rtol=2e-2, atol=2e-5), err2

    print("KERNEL_OK")
</pallas_src>

<mosaic_0001>
module attributes {stable_mosaic.version = 11 : i64} {
  func.func @_gmm_swiglu_kernel(%arg0: i32, %arg1: i32, %arg2: memref<8xi32, #tpu.memory_space<smem>>, %arg3: memref<8xi32, #tpu.memory_space<smem>>, %arg4: memref<8xi32, #tpu.memory_space<smem>>, %arg5: memref<1xi32, #tpu.memory_space<smem>>, %arg6: memref<16x128xbf16, #tpu.memory_space<vmem>>, %arg7: memref<1x128x256xbf16, #tpu.memory_space<vmem>>, %arg8: memref<1x128x128xbf16, #tpu.memory_space<vmem>>, %arg9: memref<16x128xf32, #tpu.memory_space<vmem>>, %arg10: memref<16x128xf32, #tpu.memory_space<vmem>>) attributes {dimension_semantics = [#tpu.dimension_semantics<parallel>, #tpu.dimension_semantics<arbitrary>], iteration_bounds = array<i64: 8, 2>, scalar_prefetch = 4 : i64, scratch_operands = 1 : i64, tpu.core_type = #tpu.core_type<tc>, window_params = [{transform_indices = @transform_0, window_bounds = array<i64: 16, 128>}, {transform_indices = @transform_1, window_bounds = array<i64: 1, 128, 256>}, {transform_indices = @transform_2, window_bounds = array<i64: 1, 128, 128>}, {transform_indices = @transform_3, window_bounds = array<i64: 16, 128>}]} {
    %c0 = arith.constant 0 : index
    %0 = memref.load %arg5[%c0] : memref<1xi32, #tpu.memory_space<smem>>
    %1 = arith.cmpi slt, %arg0, %0 : i32
    %2 = arith.extui %1 : i1 to i32
    %c0_i32 = arith.constant 0 : i32
    %3 = arith.cmpi ne, %2, %c0_i32 : i32
    scf.if %3 {
      %c0_i32_0 = arith.constant 0 : i32
      %4 = arith.cmpi eq, %arg1, %c0_i32_0 : i32
      %5 = arith.extui %4 : i1 to i32
      %c0_i32_1 = arith.constant 0 : i32
      %6 = arith.cmpi ne, %5, %c0_i32_1 : i32
      scf.if %6 {
        %cst_17 = arith.constant 0.000000e+00 : f32
        %30 = vector.broadcast %cst_17 : f32 to vector<16x128xf32>
        %c0_18 = arith.constant 0 : index
        %c0_19 = arith.constant 0 : index
        %31 = vector.load %arg10[%c0_18, %c0_19] : memref<16x128xf32, #tpu.memory_space<vmem>>, vector<16x128xf32>
        tpu.vector_store %arg10[%c0_18, %c0_19], %30 {strides = array<i32>} : memref<16x128xf32, #tpu.memory_space<vmem>>, vector<16x128xf32>,
      } else {
      }
      %c0_2 = arith.constant 0 : index
      %c0_3 = arith.constant 0 : index
      %7 = vector.load %arg6[%c0_2, %c0_3] : memref<16x128xbf16, #tpu.memory_space<vmem>>, vector<16x128xbf16>
      %c0_4 = arith.constant 0 : index
      %c0_5 = arith.constant 0 : index
      %c0_6 = arith.constant 0 : index
      %8 = vector.load %arg7[%c0_4, %c0_5, %c0_6] : memref<1x128x256xbf16, #tpu.memory_space<vmem>>, vector<1x128x256xbf16>
      %9 = vector.shape_cast %8 : vector<1x128x256xbf16> to vector<128x256xbf16>
      %c0_7 = arith.constant 0 : index
      %c0_8 = arith.constant 0 : index
      %c0_9 = arith.constant 0 : index
      %10 = vector.load %arg8[%c0_7, %c0_8, %c0_9] : memref<1x128x128xbf16, #tpu.memory_space<vmem>>, vector<1x128x128xbf16>
      %11 = vector.shape_cast %10 : vector<1x128x128xbf16> to vector<128x128xbf16>
      %cst = arith.constant dense<0.000000e+00> : vector<16x256xf32>
      %12 = tpu.matmul %7, %9, %cst {dimension_numbers = #tpu.dot_dimension_numbers<[1], [0], [0], [1], [0, 0, 1, 1], [], []>} : vector<16x128xbf16>, vector<128x256xbf16>, vector<16x256xf32> -> vector<16x256xf32>
      %13 = vector.extract_strided_slice %12 {offsets = [0, 0], sizes = [16, 128], strides = [1, 1]} : vector<16x256xf32> to vector<16x128xf32>
      %14 = vector.extract_strided_slice %12 {offsets = [0, 128], sizes = [16, 128], strides = [1, 1]} : vector<16x256xf32> to vector<16x128xf32>
      %15 = arith.negf %13 : vector<16x128xf32>
      %16 = math.exp %15 : vector<16x128xf32>
      %cst_10 = arith.constant 1.000000e+00 : f32
      %17 = vector.broadcast %cst_10 : f32 to vector<16x128xf32>
      %18 = arith.addf %17, %16 : vector<16x128xf32>
      %19 = arith.divf %17, %18 : vector<16x128xf32>
      %20 = arith.mulf %13, %19 : vector<16x128xf32>
      %21 = arith.mulf %20, %14 : vector<16x128xf32>
      %c0_11 = arith.constant 0 : index
      %c0_12 = arith.constant 0 : index
      %22 = vector.load %arg10[%c0_11, %c0_12] : memref<16x128xf32, #tpu.memory_space<vmem>>, vector<16x128xf32>
      %23 = arith.truncf %21 : vector<16x128xf32> to vector<16x128xbf16>
      %cst_13 = arith.constant dense<0.000000e+00> : vector<16x128xf32>
      %24 = tpu.matmul %23, %11, %cst_13 {dimension_numbers = #tpu.dot_dimension_numbers<[1], [0], [0], [1], [0, 0, 1, 1], [], []>} : vector<16x128xbf16>, vector<128x128xbf16>, vector<16x128xf32> -> vector<16x128xf32>
      %25 = arith.addf %22, %24 : vector<16x128xf32>
      %c0_14 = arith.constant 0 : index
      %c0_15 = arith.constant 0 : index
      %26 = vector.load %arg10[%c0_14, %c0_15] : memref<16x128xf32, #tpu.memory_space<vmem>>, vector<16x128xf32>
      tpu.vector_store %arg10[%c0_14, %c0_15], %25 {strides = array<i32>} : memref<16x128xf32, #tpu.memory_space<vmem>>, vector<16x128xf32>,
      %c1_i32 = arith.constant 1 : i32
      %27 = arith.cmpi eq, %arg1, %c1_i32 : i32
      %28 = arith.extui %27 : i1 to i32
      %c0_i32_16 = arith.constant 0 : i32
      %29 = arith.cmpi ne, %28, %c0_i32_16 : i32
      scf.if %29 {
        %c0_17 = arith.constant 0 : index
        %c0_18 = arith.constant 0 : index
        %30 = vector.load %arg10[%c0_17, %c0_18] : memref<16x128xf32, #tpu.memory_space<vmem>>, vector<16x128xf32>
        %c0_19 = arith.constant 0 : index
        %c0_20 = arith.constant 0 : index
        %31 = vector.load %arg9[%c0_19, %c0_20] : memref<16x128xf32, #tpu.memory_space<vmem>>, vector<16x128xf32>
        tpu.vector_store %arg9[%c0_19, %c0_20], %30 {strides = array<i32>} : memref<16x128xf32, #tpu.memory_space<vmem>>, vector<16x128xf32>,
      } else {
      }
    } else {
    }
    return
  }
  func.func @transform_0(%arg0: i32, %arg1: i32, %arg2: memref<8xi32, #tpu.memory_space<smem>>, %arg3: memref<8xi32, #tpu.memory_space<smem>>, %arg4: memref<8xi32, #tpu.memory_space<smem>>, %arg5: memref<1xi32, #tpu.memory_space<smem>>) -> (i32, i32) {
    %0 = arith.index_cast %arg0 : i32 to index
    %1 = memref.load %arg3[%0] : memref<8xi32, #tpu.memory_space<smem>>
    %c0_i32 = arith.constant 0 : i32
    %c0_i32_0 = arith.constant 0 : i32
    return %1, %c0_i32 : i32, i32
  }
  func.func @transform_1(%arg0: i32, %arg1: i32, %arg2: memref<8xi32, #tpu.memory_space<smem>>, %arg3: memref<8xi32, #tpu.memory_space<smem>>, %arg4: memref<8xi32, #tpu.memory_space<smem>>, %arg5: memref<1xi32, #tpu.memory_space<smem>>) -> (i32, i32, i32) {
    %0 = arith.index_cast %arg0 : i32 to index
    %1 = memref.load %arg2[%0] : memref<8xi32, #tpu.memory_space<smem>>
    %c0_i32 = arith.constant 0 : i32
    %c0_i32_0 = arith.constant 0 : i32
    return %1, %c0_i32, %arg1 : i32, i32, i32
  }
  func.func @transform_2(%arg0: i32, %arg1: i32, %arg2: memref<8xi32, #tpu.memory_space<smem>>, %arg3: memref<8xi32, #tpu.memory_space<smem>>, %arg4: memref<8xi32, #tpu.memory_space<smem>>, %arg5: memref<1xi32, #tpu.memory_space<smem>>) -> (i32, i32, i32) {
    %0 = arith.index_cast %arg0 : i32 to index
    %1 = memref.load %arg2[%0] : memref<8xi32, #tpu.memory_space<smem>>
    %c0_i32 = arith.constant 0 : i32
    %c0_i32_0 = arith.constant 0 : i32
    return %1, %arg1, %c0_i32 : i32, i32, i32
  }
  func.func @transform_3(%arg0: i32, %arg1: i32, %arg2: memref<8xi32, #tpu.memory_space<smem>>, %arg3: memref<8xi32, #tpu.memory_space<smem>>, %arg4: memref<8xi32, #tpu.memory_space<smem>>, %arg5: memref<1xi32, #tpu.memory_space<smem>>) -> (i32, i32) {
    %0 = arith.index_cast %arg0 : i32 to index
    %1 = memref.load %arg4[%0] : memref<8xi32, #tpu.memory_space<smem>>
    %c0_i32 = arith.constant 0 : i32
    %c0_i32_0 = arith.constant 0 : i32
    return %1, %c0_i32 : i32, i32
  }
}

module attributes {stable_mosaic.version = 11 : i64} {
  func.func @_gmm_swiglu_kernel(%arg0: i32, %arg1: i32, %arg2: memref<8xi32, #tpu.memory_space<smem>>, %arg3: memref<8xi32, #tpu.memory_space<smem>>, %arg4: memref<8xi32, #tpu.memory_space<smem>>, %arg5: memref<1xi32, #tpu.memory_space<smem>>, %arg6: memref<16x128xbf16, #tpu.memory_space<vmem>>, %arg7: memref<1x128x256xbf16, #tpu.memory_space<vmem>>, %arg8: memref<1x128x128xbf16, #tpu.memory_space<vmem>>, %arg9: memref<16x128xf32, #tpu.memory_space<vmem>>, %arg10: memref<16x128xf32, #tpu.memory_space<vmem>>) attributes {dimension_semantics = [#tpu.dimension_semantics<arbitrary>, #tpu.dimension_semantics<arbitrary>], iteration_bounds = array<i64: 8, 2>, scalar_prefetch = 4 : i64, scratch_operands = 1 : i64, tpu.core_type = #tpu.core_type<tc>, window_params = [{transform_indices = @transform_0, window_bounds = array<i64: 16, 128>}, {transform_indices = @transform_1, window_bounds = array<i64: 1, 128, 256>}, {transform_indices = @transform_2, window_bounds = array<i64: 1, 128, 128>}, {transform_indices = @transform_3, window_bounds = array<i64: 16, 128>}]} {
    %c0 = arith.constant 0 : index
    %0 = memref.load %arg5[%c0] : memref<1xi32, #tpu.memory_space<smem>>
    %1 = arith.cmpi slt, %arg0, %0 : i32
    %2 = arith.extui %1 : i1 to i32
    %c0_i32 = arith.constant 0 : i32
    %3 = arith.cmpi ne, %2, %c0_i32 : i32
    scf.if %3 {
      %c0_i32_0 = arith.constant 0 : i32
      %4 = arith.cmpi eq, %arg1, %c0_i32_0 : i32
      %5 = arith.extui %4 : i1 to i32
      %c0_i32_1 = arith.constant 0 : i32
      %6 = arith.cmpi ne, %5, %c0_i32_1 : i32
      scf.if %6 {
        %cst_17 = arith.constant 0.000000e+00 : f32
        %30 = vector.broadcast %cst_17 : f32 to vector<16x128xf32>
        %c0_18 = arith.constant 0 : index
        %c0_19 = arith.constant 0 : index
        %31 = vector.load %arg10[%c0_18, %c0_19] : memref<16x128xf32, #tpu.memory_space<vmem>>, vector<16x128xf32>
        tpu.vector_store %arg10[%c0_18, %c0_19], %30 {strides = array<i32>} : memref<16x128xf32, #tpu.memory_space<vmem>>, vector<16x128xf32>,
      } else {
      }
      %c0_2 = arith.constant 0 : index
      %c0_3 = arith.constant 0 : index
      %7 = vector.load %arg6[%c0_2, %c0_3] : memref<16x128xbf16, #tpu.memory_space<vmem>>, vector<16x128xbf16>
      %c0_4 = arith.constant 0 : index
      %c0_5 = arith.constant 0 : index
      %c0_6 = arith.constant 0 : index
      %8 = vector.load %arg7[%c0_4, %c0_5, %c0_6] : memref<1x128x256xbf16, #tpu.memory_space<vmem>>, vector<1x128x256xbf16>
      %9 = vector.shape_cast %8 : vector<1x128x256xbf16> to vector<128x256xbf16>
      %c0_7 = arith.constant 0 : index
      %c0_8 = arith.constant 0 : index
      %c0_9 = arith.constant 0 : index
      %10 = vector.load %arg8[%c0_7, %c0_8, %c0_9] : memref<1x128x128xbf16, #tpu.memory_space<vmem>>, vector<1x128x128xbf16>
      %11 = vector.shape_cast %10 : vector<1x128x128xbf16> to vector<128x128xbf16>
      %cst = arith.constant dense<0.000000e+00> : vector<16x256xf32>
      %12 = tpu.matmul %7, %9, %cst {dimension_numbers = #tpu.dot_dimension_numbers<[1], [0], [0], [1], [0, 0, 1, 1], [], []>} : vector<16x128xbf16>, vector<128x256xbf16>, vector<16x256xf32> -> vector<16x256xf32>
      %13 = vector.extract_strided_slice %12 {offsets = [0, 0], sizes = [16, 128], strides = [1, 1]} : vector<16x256xf32> to vector<16x128xf32>
      %14 = vector.extract_strided_slice %12 {offsets = [0, 128], sizes = [16, 128], strides = [1, 1]} : vector<16x256xf32> to vector<16x128xf32>
      %15 = arith.negf %13 : vector<16x128xf32>
      %16 = math.exp %15 : vector<16x128xf32>
      %cst_10 = arith.constant 1.000000e+00 : f32
      %17 = vector.broadcast %cst_10 : f32 to vector<16x128xf32>
      %18 = arith.addf %17, %16 : vector<16x128xf32>
      %19 = arith.divf %17, %18 : vector<16x128xf32>
      %20 = arith.mulf %13, %19 : vector<16x128xf32>
      %21 = arith.mulf %20, %14 : vector<16x128xf32>
      %c0_11 = arith.constant 0 : index
      %c0_12 = arith.constant 0 : index
      %22 = vector.load %arg10[%c0_11, %c0_12] : memref<16x128xf32, #tpu.memory_space<vmem>>, vector<16x128xf32>
      %23 = arith.truncf %21 : vector<16x128xf32> to vector<16x128xbf16>
      %cst_13 = arith.constant dense<0.000000e+00> : vector<16x128xf32>
      %24 = tpu.matmul %23, %11, %cst_13 {dimension_numbers = #tpu.dot_dimension_numbers<[1], [0], [0], [1], [0, 0, 1, 1], [], []>} : vector<16x128xbf16>, vector<128x128xbf16>, vector<16x128xf32> -> vector<16x128xf32>
      %25 = arith.addf %22, %24 : vector<16x128xf32>
      %c0_14 = arith.constant 0 : index
      %c0_15 = arith.constant 0 : index
      %26 = vector.load %arg10[%c0_14, %c0_15] : memref<16x128xf32, #tpu.memory_space<vmem>>, vector<16x128xf32>
      tpu.vector_store %arg10[%c0_14, %c0_15], %25 {strides = array<i32>} : memref<16x128xf32, #tpu.memory_space<vmem>>, vector<16x128xf32>,
      %c1_i32 = arith.constant 1 : i32
      %27 = arith.cmpi eq, %arg1, %c1_i32 : i32
      %28 = arith.extui %27 : i1 to i32
      %c0_i32_16 = arith.constant 0 : i32
      %29 = arith.cmpi ne, %28, %c0_i32_16 : i32
      scf.if %29 {
        %c0_17 = arith.constant 0 : index
        %c0_18 = arith.constant 0 : index
        %30 = vector.load %arg10[%c0_17, %c0_18] : memref<16x128xf32, #tpu.memory_space<vmem>>, vector<16x128xf32>
        %c0_19 = arith.constant 0 : index
        %c0_20 = arith.constant 0 : index
        %31 = vector.load %arg9[%c0_19, %c0_20] : memref<16x128xf32, #tpu.memory_space<vmem>>, vector<16x128xf32>
        tpu.vector_store %arg9[%c0_19, %c0_20], %30 {strides = array<i32>} : memref<16x128xf32, #tpu.memory_space<vmem>>, vector<16x128xf32>,
      } else {
      }
    } else {
    }
    return
  }
  func.func @transform_0(%arg0: i32, %arg1: i32, %arg2: memref<8xi32, #tpu.memory_space<smem>>, %arg3: memref<8xi32, #tpu.memory_space<smem>>, %arg4: memref<8xi32, #tpu.memory_space<smem>>, %arg5: memref<1xi32, #tpu.memory_space<smem>>) -> (i32, i32) {
    %0 = arith.index_cast %arg0 : i32 to index
    %1 = memref.load %arg3[%0] : memref<8xi32, #tpu.memory_space<smem>>
    %c0_i32 = arith.constant 0 : i32
    %c0_i32_0 = arith.constant 0 : i32
    return %1, %c0_i32 : i32, i32
  }
  func.func @transform_1(%arg0: i32, %arg1: i32, %arg2: memref<8xi32, #tpu.memory_space<smem>>, %arg3: memref<8xi32, #tpu.memory_space<smem>>, %arg4: memref<8xi32, #tpu.memory_space<smem>>, %arg5: memref<1xi32, #tpu.memory_space<smem>>) -> (i32, i32, i32) {
    %0 = arith.index_cast %arg0 : i32 to index
    %1 = memref.load %arg2[%0] : memref<8xi32, #tpu.memory_space<smem>>
    %c0_i32 = arith.constant 0 : i32
    %c0_i32_0 = arith.constant 0 : i32
    return %1, %c0_i32, %arg1 : i32, i32, i32
  }
  func.func @transform_2(%arg0: i32, %arg1: i32, %arg2: memref<8xi32, #tpu.memory_space<smem>>, %arg3: memref<8xi32, #tpu.memory_space<smem>>, %arg4: memref<8xi32, #tpu.memory_space<smem>>, %arg5: memref<1xi32, #tpu.memory_space<smem>>) -> (i32, i32, i32) {
    %0 = arith.index_cast %arg0 : i32 to index
    %1 = memref.load %arg2[%0] : memref<8xi32, #tpu.memory_space<smem>>
    %c0_i32 = arith.constant 0 : i32
    %c0_i32_0 = arith.constant 0 : i32
    return %1, %arg1, %c0_i32 : i32, i32, i32
  }
  func.func @transform_3(%arg0: i32, %arg1: i32, %arg2: memref<8xi32, #tpu.memory_space<smem>>, %arg3: memref<8xi32, #tpu.memory_space<smem>>, %arg4: memref<8xi32, #tpu.memory_space<smem>>, %arg5: memref<1xi32, #tpu.memory_space<smem>>) -> (i32, i32) {
    %0 = arith.index_cast %arg0 : i32 to index
    %1 = memref.load %arg4[%0] : memref<8xi32, #tpu.memory_space<smem>>
    %c0_i32 = arith.constant 0 : i32
    %c0_i32_0 = arith.constant 0 : i32
    return %1, %c0_i32 : i32, i32
  }
}

</mosaic_0001>

<llo_original>
// kernel: tpu_custom_call.1
$region0: #{tpu_custom_call.1}
  #allocation0 [shape = 'u32[]', space=smem, size = 0x4, offset = 0x4, fixed_abs, tag = 'smem constant byte address 0x4 - core index']
  #allocation1 [shape = 'u32[144,128]{1,0:T(1,128)}', space=vmem, size = 0x12000, scoped, tag = 'internal scratch']
  #allocation2 [shape = 'f32[16,128]{1,0:T(8,128)}', space=vmem, size = 0x2000, scoped, tag = 'scratch operand']
  #allocation3 [shape = 's32[1]{0}', space=sflag, size = 0x4, scoped, tag = 'scoped memory for tpu_custom_call.1']
  #allocation4 [shape = 'u8[512]{0}', space=smem, size = 0x200, scoped, tag = 'prefetched SMEM operand 0']
  #allocation5 [shape = 'u8[512]{0}', space=smem, size = 0x200, scoped, tag = 'prefetched SMEM operand 1']
  #allocation6 [shape = 'u8[512]{0}', space=smem, size = 0x200, scoped, tag = 'prefetched SMEM operand 2']
  #allocation7 [shape = 's32[1]{0:T(128)S(6)}', space=smem, size = 0x200, scoped, tag = 'prefetched SMEM operand 3']
  %s0 = inlined_call_operand.vmem [shape: s32[8], index: 0, kind: input, shape index: {}]
  %s1 = inlined_call_operand.vmem [shape: s32[8], index: 1, kind: input, shape index: {}]
  %s2 = inlined_call_operand.vmem [shape: s32[8], index: 2, kind: input, shape index: {}]
  %s3 = inlined_call_operand.<no memory space> [shape: s32[1], index: 3, kind: input, shape index: {}]
  %s4 = inlined_call_operand.hbm [shape: bf16[128,128], index: 4, kind: input, shape index: {}]
  %s5 = inlined_call_operand.hbm [shape: bf16[8,128,512], index: 5, kind: input, shape index: {}]
  %s6 = inlined_call_operand.hbm [shape: bf16[8,256,128], index: 6, kind: input, shape index: {}]
  %s7 = inlined_call_operand.hbm [shape: f32[144,128], index: 7, kind: output, shape index: {}]
  %s8 = sld [smem:[#allocation0]]
  $region69: #{tpu_custom_call.1} parent=0
    _
  %s10 = ssub.s32 1, %s8
  %s11 = scalar_select 0, %s10, %s8
  %s12 = sshll.u32 %s0, 4
  %s13 = int_to_ptr.vmem [resolvable:$true] %s12
  %15 = dma.vmem_to_smem %s13, 16, [#allocation4], [#allocation3]
  %s16 = sshll.u32 %s1, 4
  %s17 = int_to_ptr.vmem [resolvable:$true] %s16
  %19 = dma.vmem_to_smem %s17, 16, [#allocation5], [#allocation3]
  %s20 = sshll.u32 %s2, 4
  %s21 = int_to_ptr.vmem [resolvable:$true] %s20
  %23 = dma.vmem_to_smem %s21, 16, [#allocation6], [#allocation3]
  %24 = sst [smem:[#allocation7]] %s3
  %25 = dma.done [#allocation3], 48
  %26 = sfence
  $region1: #{tpu_custom_call.1} parent=0
    #allocation8 [shape = 'u8[8192]{0}', space=vmem, size = 0x2000, scoped, tag = 'input window, operand 4']
    #allocation9 [shape = 's32[2]{0}', space=sflag, size = 0x8, scoped, tag = 'scoped memory for tpu_custom_call.1']
    #allocation10 [shape = 's32[2]{0}', space=sflag, size = 0x8, scoped, tag = 'scoped memory for tpu_custom_call.1']
    #allocation11 [shape = 'u8[131072]{0}', space=vmem, size = 0x20000, scoped, tag = 'input window, operand 5']
    #allocation12 [shape = 's32[2]{0}', space=sflag, size = 0x8, scoped, tag = 'scoped memory for tpu_custom_call.1']
    #allocation13 [shape = 'u8[65536]{0}', space=vmem, size = 0x10000, scoped, tag = 'input window, operand 6']
    #allocation14 [shape = 'u8[16384]{0}', space=vmem, size = 0x4000, scoped, tag = 'output window, operand 0']
    %27 = vsyncpa [#allocation9], 0
    %s28 = scalar_lea.sflag [#allocation9], 1
    %29 = vsyncpa %s28, 0
    %30 = vsyncpa [#allocation12], 0
    %s31 = scalar_lea.sflag [#allocation12], 1
    %32 = vsyncpa %s31, 0
    %33 = vsyncpa [#allocation10], 0
    %s34 = scalar_lea.sflag [#allocation10], 1
    %35 = vsyncpa %s34, 0
    loop: start=0, step=1, limit=18
    $region2: #{tpu_custom_call.1} parent=1 // loop_pre_header
      _
    $region3: #{tpu_custom_call.1} parent=1 // loop_header
      %s37 = sphi 0, %s41
      %p38 = scmp.ge.s32.totalorder %s37, 18
      %s44 = sphi 0, %s56
      %s45 = sphi 0, %s52
      %s46 = sphi 0, %s44
      %s47 = sphi 0, %s45
      %s48 = sphi 0, %s46
      %s49 = sphi 0, %s47
      %s61 = sphi 0, %s63
      %s64 = sphi 0, %s61
      %s65 = sphi 0, %s64
      %s81 = sphi 0, %s65
      %s91 = sphi 0, %s93
      %s94 = sphi 0, %s91
      %s95 = sphi 0, %s94
      %s111 = sphi 0, %s95
      %s121 = sphi 0, %s123
      %s124 = sphi 0, %s121
      %s125 = sphi 0, %s124
      %s141 = sphi 0, %s125
      %s149 = sphi 0, %s151
      %s152 = sphi 0, %s149
      %s153 = sphi 0, %s152
      %s169 = sphi 0, %s153
    $region4: #{tpu_custom_call.1} parent=1 // loop_header_branch
      %40 = sbr.rel (%p38) target = $region8
    $region5: #{tpu_custom_call.1} parent=1 // loop_body
      %s42 = ssub.s32 %s37, 1
      %s43 = ssub.s32 %s37, 2
      %s50 = sadd.s32 1, %s45
      %p51 = scmp.ge.s32.totalorder %s50, 2
      %s52 = scalar_select %p51, 0, %s50
      %s53 = sadd.s32 1, %s44
      %s54 = scalar_select %p51, %s53, %s44
      %p55 = scmp.ge.s32.totalorder %s54, 8
      %s56 = scalar_select %p55, 0, %s54
      %s57 = sld [smem:[#allocation5 + %s44]]
      %s58 = sld [smem:[#allocation5 + %s56]]
      %s59 = ssub.s32 %s57, %s58
      %p60 = scmp.eq.s32.totalorder %s59, 0
      %s62 = sadd.s32 %s61, 1
      %s63 = scalar_select %p60, %s61, %s62
      %p66 = pneg %p60
      %p67 = scmp.eq.s32.totalorder %s37, 15
      %p68 = por %p66, %p67
      %p69 = scmp.ne.s32.totalorder %s61, %s64
      %p70 = scmp.eq.s32.totalorder %s37, 0
      %p71 = por %p69, %p70
      %p72 = scmp.ne.s32.totalorder %s61, %s64
      %p73 = scmp.eq.s32.totalorder %s42, 15
      %p74 = por %p72, %p73
      %p75 = scmp.ne.s32.totalorder %s64, %s65
      %p76 = scmp.eq.s32.totalorder %s42, 0
      %p77 = por %p75, %p76
      %p78 = scmp.ne.s32.totalorder %s64, %s65
      %p79 = scmp.eq.s32.totalorder %s43, 15
      %p80 = por %p78, %p79
      %p82 = scmp.ne.s32.totalorder %s65, %s81
      %p83 = scmp.eq.s32.totalorder %s43, 0
      %p84 = por %p82, %p83
      %s85 = sld [smem:[#allocation4 + %s44]]
      %s86 = sld [smem:[#allocation4 + %s56]]
      %s87 = ssub.s32 %s85, %s86
      %s88 = ssub.s32 %s45, %s52
      %s89 = sor.u32 %s87, %s88
      %p90 = scmp.eq.s32.totalorder %s89, 0
      %s92 = sadd.s32 %s91, 1
      %s93 = scalar_select %p90, %s91, %s92
      %p96 = pneg %p90
      %p97 = scmp.eq.s32.totalorder %s37, 15
      %p98 = por %p96, %p97
      %p99 = scmp.ne.s32.totalorder %s91, %s94
      %p100 = scmp.eq.s32.totalorder %s37, 0
      %p101 = por %p99, %p100
      %p102 = scmp.ne.s32.totalorder %s91, %s94
      %p103 = scmp.eq.s32.totalorder %s42, 15
      %p104 = por %p102, %p103
      %p105 = scmp.ne.s32.totalorder %s94, %s95
      %p106 = scmp.eq.s32.totalorder %s42, 0
      %p107 = por %p105, %p106
      %p108 = scmp.ne.s32.totalorder %s94, %s95
      %p109 = scmp.eq.s32.totalorder %s43, 15
      %p110 = por %p108, %p109
      %p112 = scmp.ne.s32.totalorder %s95, %s111
      %p113 = scmp.eq.s32.totalorder %s43, 0
      %p114 = por %p112, %p113
      %s115 = sld [smem:[#allocation4 + %s44]]
      %s116 = sld [smem:[#allocation4 + %s56]]
      %s117 = ssub.s32 %s115, %s116
      %s118 = ssub.s32 %s45, %s52
      %s119 = sor.u32 %s117, %s118
      %p120 = scmp.eq.s32.totalorder %s119, 0
      %s122 = sadd.s32 %s121, 1
      %s123 = scalar_select %p120, %s121, %s122
      %p126 = pneg %p120
      %p127 = scmp.eq.s32.totalorder %s37, 15
      %p128 = por %p126, %p127
      %p129 = scmp.ne.s32.totalorder %s121, %s124
      %p130 = scmp.eq.s32.totalorder %s37, 0
      %p131 = por %p129, %p130
      %p132 = scmp.ne.s32.totalorder %s121, %s124
      %p133 = scmp.eq.s32.totalorder %s42, 15
      %p134 = por %p132, %p133
      %p135 = scmp.ne.s32.totalorder %s124, %s125
      %p136 = scmp.eq.s32.totalorder %s42, 0
      %p137 = por %p135, %p136
      %p138 = scmp.ne.s32.totalorder %s124, %s125
      %p139 = scmp.eq.s32.totalorder %s43, 15
      %p140 = por %p138, %p139
      %p142 = scmp.ne.s32.totalorder %s125, %s141
      %p143 = scmp.eq.s32.totalorder %s43, 0
      %p144 = por %p142, %p143
      %s145 = sld [smem:[#allocation6 + %s44]]
      %s146 = sld [smem:[#allocation6 + %s56]]
      %s147 = ssub.s32 %s145, %s146
      %p148 = scmp.eq.s32.totalorder %s147, 0
      %s150 = sadd.s32 %s149, 1
      %s151 = scalar_select %p148, %s149, %s150
      %p154 = pneg %p148
      %p155 = scmp.eq.s32.totalorder %s37, 15
      %p156 = por %p154, %p155
      %p157 = scmp.ne.s32.totalorder %s149, %s152
      %p158 = scmp.eq.s32.totalorder %s37, 0
      %p159 = por %p157, %p158
      %p160 = scmp.ne.s32.totalorder %s149, %s152
      %p161 = scmp.eq.s32.totalorder %s42, 15
      %p162 = por %p160, %p161
      %p163 = scmp.ne.s32.totalorder %s152, %s153
      %p164 = scmp.eq.s32.totalorder %s42, 0
      %p165 = por %p163, %p164
      %p166 = scmp.ne.s32.totalorder %s152, %s153
      %p167 = scmp.eq.s32.totalorder %s43, 15
      %p168 = por %p166, %p167
      %p170 = scmp.ne.s32.totalorder %s153, %s169
      %p171 = scmp.eq.s32.totalorder %s43, 0
      %p172 = por %p170, %p171
      %p173 = scmp.le.s32.totalorder 1, %s37
      %p174 = scmp.lt.s32.totalorder %s37, 17
      %p175 = pnand %p173, %p174
      %p176 = pneg %p175
      // Predicated region
      $region9: #{tpu_custom_call.1} parent=5 // pred_check
        _
      $region10: #{tpu_custom_call.1} parent=5 // pred_check_branch
        %178 = sbr.rel (%p175) target = $region12
      $region11: #{tpu_custom_call.1} parent=5 // pred_region
        %s179 = ssub.s32 %s37, 1
      $region12: #{tpu_custom_call.1} parent=5 // pred_fallthru
        _
      %p180 = scmp.lt.s32.totalorder %s37, 16
      // Predicated region
      $region13: #{tpu_custom_call.1} parent=5 // pred_check
        %p181 = pneg %p180
      $region14: #{tpu_custom_call.1} parent=5 // pred_check_branch
        %183 = sbr.rel (%p181) target = $region16
      $region15: #{tpu_custom_call.1} parent=5 // pred_region
        // Predicated region
        $region17: #{tpu_custom_call.1} parent=15 // pred_check
          %p184 = pneg %p71
        $region18: #{tpu_custom_call.1} parent=15 // pred_check_branch
          %186 = sbr.rel (%p184) target = $region20
        $region19: #{tpu_custom_call.1} parent=15 // pred_region
          %s187 = sand.u32 %s61, 1
          %s188 = scalar_lea.sflag [#allocation9], %s187
          %s189 = sand.u32 %s61, 1
          %s190 = smul.addr %s189, 8
          %s191 = scalar_lea.vmem [#allocation8], %s190
          %s192 = sld [smem:[#allocation5 + %s44]]
          %s193 = smul.u32 2, %s192
          %s195 = ssub.s32 128, 128
          %196 = vsyncadd %s188, %s195
          %s197 = smul.addr %s193, 64
          %s198 = scalar_lea.hbm %s4, %s197
          %s199 = sshll.u32 %s191, 4
          %s200 = int_to_ptr.vmem [resolvable:$true] %s199
          %205 = dma.hbm_to_vmem [thread:$0]  %s198, 128, %s200, %s188, 64, 64, 4
        $region20: #{tpu_custom_call.1} parent=15 // pred_fallthru
          _
        // Predicated region
        $region21: #{tpu_custom_call.1} parent=15 // pred_check
          %p206 = pneg %p101
        $region22: #{tpu_custom_call.1} parent=15 // pred_check_branch
          %208 = sbr.rel (%p206) target = $region24
        $region23: #{tpu_custom_call.1} parent=15 // pred_region
          %s209 = sand.u32 %s37, 1
          %s210 = scalar_lea.sflag [#allocation12], %s209
          %s211 = sand.u32 %s91, 1
          %s212 = smul.addr %s211, 128
          %s213 = scalar_lea.vmem [#allocation11], %s212
          %s214 = sld [smem:[#allocation4 + %s44]]
          %s215 = smul.u32 2, %s45
          %s217 = ssub.s32 2048, 2048
          %218 = vsyncadd %s210, %s217
          %s219 = smul.addr %s214, 64
          %s220 = sadd.s32 %s215, %s219
          %s221 = smul.addr %s220, 64
          %s222 = scalar_lea.hbm %s5, %s221
          %s223 = sshll.u32 %s213, 4
          %s224 = int_to_ptr.vmem [resolvable:$true] %s223
          %229 = dma.hbm_to_vmem [thread:$0]  %s222, 2048, %s224, %s210, 256, 128, 8
        $region24: #{tpu_custom_call.1} parent=15 // pred_fallthru
          _
        // Predicated region
        $region25: #{tpu_custom_call.1} parent=15 // pred_check
          %p230 = pneg %p131
        $region26: #{tpu_custom_call.1} parent=15 // pred_check_branch
          %232 = sbr.rel (%p230) target = $region28
        $region27: #{tpu_custom_call.1} parent=15 // pred_region
          %s233 = sand.u32 %s37, 1
          %s234 = scalar_lea.sflag [#allocation12], %s233
          %s235 = sand.u32 %s121, 1
          %s236 = smul.addr %s235, 64
          %s237 = scalar_lea.vmem [#allocation13], %s236
          %s238 = sld [smem:[#allocation4 + %s44]]
          %s239 = smul.u32 16, %s45
          %s241 = ssub.s32 1024, 1024
          %242 = vsyncadd %s234, %s241
          %s243 = smul.addr %s238, 32
          %s244 = sadd.s32 %s239, %s243
          %s245 = smul.addr %s244, 64
          %s246 = scalar_lea.hbm %s6, %s245
          %s247 = sshll.u32 %s237, 4
          %s248 = int_to_ptr.vmem [resolvable:$true] %s247
          %253 = dma.hbm_to_vmem [thread:$0]  %s246, 1024, %s248, %s234, 64, 64, 4
        $region28: #{tpu_custom_call.1} parent=15 // pred_fallthru
          _
      $region16: #{tpu_custom_call.1} parent=5 // pred_fallthru
        _
      %p254 = scmp.le.s32.totalorder 1, %s37
      %p255 = scmp.lt.s32.totalorder %s37, 17
      %p256 = pnand %p254, %p255
      %p257 = pneg %p256
      // Predicated region
      $region29: #{tpu_custom_call.1} parent=5 // pred_check
        _
      $region30: #{tpu_custom_call.1} parent=5 // pred_check_branch
        %259 = sbr.rel (%p256) target = $region32
      $region31: #{tpu_custom_call.1} parent=5 // pred_region
        %s260 = ssub.s32 %s37, 1
        %s261 = sand.u32 %s64, 1
        %s262 = scalar_lea.sflag [#allocation9], %s261
        %s263 = sand.u32 %s64, 1
        %s264 = smul.addr %s263, 8
        %s265 = scalar_lea.vmem [#allocation8], %s264
        // Predicated region
        $region33: #{tpu_custom_call.1} parent=31 // pred_check
          %p266 = pneg %p77
        $region34: #{tpu_custom_call.1} parent=31 // pred_check_branch
          %268 = sbr.rel (%p266) target = $region36
        $region35: #{tpu_custom_call.1} parent=31 // pred_region
          %269 = dma.done %s262, 128
        $region36: #{tpu_custom_call.1} parent=31 // pred_fallthru
          _
        %s270 = sand.u32 %s42, 1
        %s271 = scalar_lea.sflag [#allocation12], %s270
        %s272 = sand.u32 %s94, 1
        %s273 = smul.addr %s272, 128
        %s274 = scalar_lea.vmem [#allocation11], %s273
        // Predicated region
        $region37: #{tpu_custom_call.1} parent=31 // pred_check
          %p275 = pneg %p107
        $region38: #{tpu_custom_call.1} parent=31 // pred_check_branch
          %277 = sbr.rel (%p275) target = $region40
        $region39: #{tpu_custom_call.1} parent=31 // pred_region
          %278 = dma.done %s271, 2048
        $region40: #{tpu_custom_call.1} parent=31 // pred_fallthru
          _
        %s279 = sand.u32 %s42, 1
        %s280 = scalar_lea.sflag [#allocation12], %s279
        %s281 = sand.u32 %s124, 1
        %s282 = smul.addr %s281, 64
        %s283 = scalar_lea.vmem [#allocation13], %s282
        // Predicated region
        $region41: #{tpu_custom_call.1} parent=31 // pred_check
          %p284 = pneg %p137
        $region42: #{tpu_custom_call.1} parent=31 // pred_check_branch
          %286 = sbr.rel (%p284) target = $region44
        $region43: #{tpu_custom_call.1} parent=31 // pred_region
          %287 = dma.done %s280, 1024
        $region44: #{tpu_custom_call.1} parent=31 // pred_fallthru
          _
        %s288 = sand.u32 %s64, 1
        %s289 = scalar_lea.sflag [#allocation9], %s288
        %s290 = sand.u32 %s64, 1
        %s291 = smul.addr %s290, 8
        %s292 = scalar_lea.vmem [#allocation8], %s291
        %p293 = pneg %p77
        %p294 = pneg %p74
        %s295 = sand.u32 %s42, 1
        %s296 = scalar_lea.sflag [#allocation12], %s295
        %s297 = sand.u32 %s94, 1
        %s298 = smul.addr %s297, 128
        %s299 = scalar_lea.vmem [#allocation11], %s298
        %p300 = pneg %p107
        %p301 = pneg %p104
        %s302 = sand.u32 %s42, 1
        %s303 = scalar_lea.sflag [#allocation12], %s302
        %s304 = sand.u32 %s124, 1
        %s305 = smul.addr %s304, 64
        %s306 = scalar_lea.vmem [#allocation13], %s305
        %p307 = pneg %p137
        %p308 = pneg %p134
        %p309 = pneg %p165
        %p310 = pneg %p162
        %s311 = sand.u32 %s152, 1
        %s312 = scalar_lea.sflag [#allocation10], %s311
        %s313 = sand.u32 %s152, 1
        %s314 = smul.addr %s313, 16
        %s315 = scalar_lea.vmem [#allocation14], %s314
        %s316 = sld [smem:[#allocation5 + %s46]]
        %s317 = smul.u32 2, %s316
        %s318 = sld [smem:[#allocation4 + %s46]]
        %s319 = smul.u32 2, %s47
        %s320 = sld [smem:[#allocation4 + %s46]]
        %s321 = smul.u32 16, %s47
        %s322 = sld [smem:[#allocation6 + %s46]]
        %s323 = smul.u32 2, %s322
        %s325 = sld [smem:[#allocation7]]
        %p326 = scmp.lt.s32.totalorder %s46, %s325
        // Predicated region
        $region45: #{tpu_custom_call.1} parent=31 // pred_check
          %p327 = pneg %p326
        $region46: #{tpu_custom_call.1} parent=31 // pred_check_branch
          %329 = sbr.rel (%p327) target = $region48
        $region47: #{tpu_custom_call.1} parent=31 // pred_region
          %p330 = scmp.eq.s32.totalorder %s47, 0
          // Predicated region
          $region49: #{tpu_custom_call.1} parent=47 // pred_check
            %p331 = pneg %p330
          $region50: #{tpu_custom_call.1} parent=47 // pred_check_branch
            %333 = sbr.rel (%p331) target = $region52
          $region51: #{tpu_custom_call.1} parent=47 // pred_region
            %334 = vst [vmem:[#allocation2] sm:$0xff] 0.0
            %335 = vst [vmem:[#allocation2 + $0x8] sm:$0xff] 0.0
          $region52: #{tpu_custom_call.1} parent=47 // pred_fallthru
            _
          %v336 = vld [vmem:[%s265] sm:$0xf]
          %v337 = vld [vmem:[%s265 + $0x4] sm:$0xf]
          %v338 = vld [vmem:[%s274] sm:$0xff]
          %v339 = vld [vmem:[%s274 + $0x8] sm:$0xff]
          %v340 = vld [vmem:[%s274 + $0x10] sm:$0xff]
          %v341 = vld [vmem:[%s274 + $0x18] sm:$0xff]
          %v342 = vld [vmem:[%s274 + $0x20] sm:$0xff]
          %v343 = vld [vmem:[%s274 + $0x28] sm:$0xff]
          %v344 = vld [vmem:[%s274 + $0x30] sm:$0xff]
          %v345 = vld [vmem:[%s274 + $0x38] sm:$0xff]
          %v346 = vld [vmem:[%s274 + $0x40] sm:$0xff]
          %v347 = vld [vmem:[%s274 + $0x48] sm:$0xff]
          %v348 = vld [vmem:[%s274 + $0x50] sm:$0xff]
          %v349 = vld [vmem:[%s274 + $0x58] sm:$0xff]
          %v350 = vld [vmem:[%s274 + $0x60] sm:$0xff]
          %v351 = vld [vmem:[%s274 + $0x68] sm:$0xff]
          %v352 = vld [vmem:[%s274 + $0x70] sm:$0xff]
          %v353 = vld [vmem:[%s274 + $0x78] sm:$0xff]
          %v354 = vld [vmem:[%s283] sm:$0xf]
          %v355 = vld [vmem:[%s283 + $0x4] sm:$0xf]
          %v356 = vld [vmem:[%s283 + $0x8] sm:$0xf]
          %v357 = vld [vmem:[%s283 + $0xc] sm:$0xf]
          %v358 = vld [vmem:[%s283 + $0x10] sm:$0xf]
          %v359 = vld [vmem:[%s283 + $0x14] sm:$0xf]
          %v360 = vld [vmem:[%s283 + $0x18] sm:$0xf]
          %v361 = vld [vmem:[%s283 + $0x1c] sm:$0xf]
          %v362 = vld [vmem:[%s283 + $0x20] sm:$0xf]
          %v363 = vld [vmem:[%s283 + $0x24] sm:$0xf]
          %v364 = vld [vmem:[%s283 + $0x28] sm:$0xf]
          %v365 = vld [vmem:[%s283 + $0x2c] sm:$0xf]
          %v366 = vld [vmem:[%s283 + $0x30] sm:$0xf]
          %v367 = vld [vmem:[%s283 + $0x34] sm:$0xf]
          %v368 = vld [vmem:[%s283 + $0x38] sm:$0xf]
          %v369 = vld [vmem:[%s283 + $0x3c] sm:$0xf]
          %v372 = vunpack.c.l.b16 %v336
          %v373 = vunpack.c.l.b16 %v337
          %v374 = vpack.c.b16 %v373, %v372
          %v392 = vunpack.c.l.b16 %v338
          %v393 = vunpack.c.h.b16 %v338
          %v394 = vunpack.c.l.b16 %v339
          %v395 = vunpack.c.h.b16 %v339
          %v396 = vunpack.c.l.b16 %v340
          %v397 = vunpack.c.h.b16 %v340
          %v398 = vunpack.c.l.b16 %v341
          %v399 = vunpack.c.h.b16 %v341
          %v400 = vunpack.c.l.b16 %v342
          %v401 = vunpack.c.h.b16 %v342
          %v402 = vunpack.c.l.b16 %v343
          %v403 = vunpack.c.h.b16 %v343
          %v404 = vunpack.c.l.b16 %v344
          %v405 = vunpack.c.h.b16 %v344
          %v406 = vunpack.c.l.b16 %v345
          %v407 = vunpack.c.h.b16 %v345
          %v408 = vunpack.c.l.b16 %v346
          %v409 = vunpack.c.h.b16 %v346
          %v410 = vunpack.c.l.b16 %v347
          %v411 = vunpack.c.h.b16 %v347
          %v412 = vunpack.c.l.b16 %v348
          %v413 = vunpack.c.h.b16 %v348
          %v414 = vunpack.c.l.b16 %v349
          %v415 = vunpack.c.h.b16 %v349
          %v416 = vunpack.c.l.b16 %v350
          %v417 = vunpack.c.h.b16 %v350
          %v418 = vunpack.c.l.b16 %v351
          %v419 = vunpack.c.h.b16 %v351
          %v420 = vunpack.c.l.b16 %v352
          %v421 = vunpack.c.h.b16 %v352
          %v422 = vunpack.c.l.b16 %v353
          %v423 = vunpack.c.h.b16 %v353
          %v424 = vpack.c.b16 %v394, %v392
          %v425 = vpack.c.b16 %v395, %v393
          %v426 = vpack.c.b16 %v398, %v396
          %v427 = vpack.c.b16 %v399, %v397
          %v428 = vpack.c.b16 %v402, %v400
          %v429 = vpack.c.b16 %v403, %v401
          %v430 = vpack.c.b16 %v406, %v404
          %v431 = vpack.c.b16 %v407, %v405
          %v432 = vpack.c.b16 %v410, %v408
          %v433 = vpack.c.b16 %v411, %v409
          %v434 = vpack.c.b16 %v414, %v412
          %v435 = vpack.c.b16 %v415, %v413
          %v436 = vpack.c.b16 %v418, %v416
          %v437 = vpack.c.b16 %v419, %v417
          %v438 = vpack.c.b16 %v422, %v420
          %v439 = vpack.c.b16 %v423, %v421
          %456 = vmatprep.subr.bf16.mxu0 %v425
          %457 = vmatpush1.bf16.msra.mxu0 %v424
          %458 = vmatprep.subr.bf16.mxu0 %v427
          %459 = vmatpush1.bf16.msra.mxu0 %v426
          %460 = vmatprep.subr.bf16.mxu0 %v429
          %461 = vmatpush1.bf16.msra.mxu0 %v428
          %462 = vmatprep.subr.bf16.mxu0 %v431
          %463 = vmatpush1.bf16.msra.mxu0 %v430
          %464 = vmatprep.subr.bf16.mxu0 %v433
          %465 = vmatpush1.bf16.msra.mxu0 %v432
          %466 = vmatprep.subr.bf16.mxu0 %v435
          %467 = vmatpush1.bf16.msra.mxu0 %v434
          %468 = vmatprep.subr.bf16.mxu0 %v437
          %469 = vmatpush1.bf16.msra.mxu0 %v436
          %470 = vmatprep.subr.bf16.mxu0 %v439
          %471 = vmatpush1.bf16.msra.mxu0 %v438
          %472 = vmatprep.subr.bf16.mxu0 0
          %473 = vmatpush1.bf16.msra.mxu0 0
          %474 = vmatprep.subr.bf16.mxu0 0
          %475 = vmatpush1.bf16.msra.mxu0 0
          %476 = vmatprep.subr.bf16.mxu0 0
          %477 = vmatpush1.bf16.msra.mxu0 0
          %478 = vmatprep.subr.bf16.mxu0 0
          %479 = vmatpush1.bf16.msra.mxu0 0
          %480 = vmatprep.subr.bf16.mxu0 0
          %481 = vmatpush1.bf16.msra.mxu0 0
          %482 = vmatprep.subr.bf16.mxu0 0
          %483 = vmatpush1.bf16.msra.mxu0 0
          %484 = vmatprep.subr.bf16.mxu0 0
          %485 = vmatpush1.bf16.msra.mxu0 0
          %486 = vmatprep.subr.bf16.mxu0 0
          %487 = vmatpush1.bf16.msra.mxu0 0
          %488 = vmatprep.mubr.bf16.mxu0 0
          %489 = vmatmul.mubr.bf16.gmra.mrb[0].mxu0 %v374
          %v490 = vpop.f32.mrb[0].mxu0
          %v491 = vadd.f32 0.0, %v490
          %v492 = vpop.f32.mrb[0].mxu0
          %v493 = vadd.f32 0.0, %v492
          %v494 = vpop.f32.mrb[0].mxu0
          %v495 = vadd.f32 0.0, %v494
          %v496 = vpop.f32.mrb[0].mxu0
          %v497 = vadd.f32 0.0, %v496
          %498 = vdwg.mxu0
          %v499 = vxor.u32 %v491, 2147483648
          %v500 = vxor.u32 %v495, 2147483648
          %v501 = vmul.f32 %v499, 1.442695
          %v502 = vpow.pop %v501
          %v503 = vmul.f32 %v500, 1.442695
          %v504 = vpow.pop %v503
          %v505 = vadd.f32 %v502, 1.0
          %v506 = vadd.f32 %v504, 1.0
          %v507 = vrcp.pop %v505
          %v508 = vmul.f32 1.0, %v507
          %v509 = vrcp.pop %v506
          %v510 = vmul.f32 1.0, %v509
          %v511 = vmul.f32 %v491, %v508
          %v512 = vmul.f32 %v495, %v510
          %v513 = vmul.f32 %v511, %v493
          %v514 = vmul.f32 %v512, %v497
          %v515 = vld [vmem:[#allocation2] sm:$0xff]
          %v516 = vld [vmem:[#allocation2 + $0x8] sm:$0xff]
          %v517 = vpack.c.bf16 %v514, %v513
          %v534 = vunpack.c.l.b16 %v354
          %v535 = vunpack.c.l.b16 %v355
          %v536 = vunpack.c.l.b16 %v356
          %v537 = vunpack.c.l.b16 %v357
          %v538 = vunpack.c.l.b16 %v358
          %v539 = vunpack.c.l.b16 %v359
          %v540 = vunpack.c.l.b16 %v360
          %v541 = vunpack.c.l.b16 %v361
          %v542 = vunpack.c.l.b16 %v362
          %v543 = vunpack.c.l.b16 %v363
          %v544 = vunpack.c.l.b16 %v364
          %v545 = vunpack.c.l.b16 %v365
          %v546 = vunpack.c.l.b16 %v366
          %v547 = vunpack.c.l.b16 %v367
          %v548 = vunpack.c.l.b16 %v368
          %v549 = vunpack.c.l.b16 %v369
          %v550 = vpack.c.b16 %v535, %v534
          %v551 = vpack.c.b16 %v537, %v536
          %v552 = vpack.c.b16 %v539, %v538
          %v553 = vpack.c.b16 %v541, %v540
          %v554 = vpack.c.b16 %v543, %v542
          %v555 = vpack.c.b16 %v545, %v544
          %v556 = vpack.c.b16 %v547, %v546
          %v557 = vpack.c.b16 %v549, %v548
          %566 = vmatprep.subr.bf16.mxu0 0
          %567 = vmatpush1.bf16.msra.mxu0 %v550
          %568 = vmatprep.subr.bf16.mxu0 0
          %569 = vmatpush1.bf16.msra.mxu0 %v551
          %570 = vmatprep.subr.bf16.mxu0 0
          %571 = vmatpush1.bf16.msra.mxu0 %v552
          %572 = vmatprep.subr.bf16.mxu0 0
          %573 = vmatpush1.bf16.msra.mxu0 %v553
          %574 = vmatprep.subr.bf16.mxu0 0
          %575 = vmatpush1.bf16.msra.mxu0 %v554
          %576 = vmatprep.subr.bf16.mxu0 0
          %577 = vmatpush1.bf16.msra.mxu0 %v555
          %578 = vmatprep.subr.bf16.mxu0 0
          %579 = vmatpush1.bf16.msra.mxu0 %v556
          %580 = vmatprep.subr.bf16.mxu0 0
          %581 = vmatpush1.bf16.msra.mxu0 %v557
          %582 = vmatprep.subr.bf16.mxu0 0
          %583 = vmatpush1.bf16.msra.mxu0 0
          %584 = vmatprep.subr.bf16.mxu0 0
          %585 = vmatpush1.bf16.msra.mxu0 0
          %586 = vmatprep.subr.bf16.mxu0 0
          %587 = vmatpush1.bf16.msra.mxu0 0
          %588 = vmatprep.subr.bf16.mxu0 0
          %589 = vmatpush1.bf16.msra.mxu0 0
          %590 = vmatprep.subr.bf16.mxu0 0
          %591 = vmatpush1.bf16.msra.mxu0 0
          %592 = vmatprep.subr.bf16.mxu0 0
          %593 = vmatpush1.bf16.msra.mxu0 0
          %594 = vmatprep.subr.bf16.mxu0 0
          %595 = vmatpush1.bf16.msra.mxu0 0
          %596 = vmatprep.subr.bf16.mxu0 0
          %597 = vmatpush1.bf16.msra.mxu0 0
          %598 = vmatprep.mubr.bf16.mxu0 0
          %599 = vmatmul.mubr.bf16.gmra.mrb[0].mxu0 %v517
          %v600 = vpop.f32.mrb[0].mxu0
          %v601 = vadd.f32 0.0, %v600
          %v602 = vpop.f32.mrb[0].mxu0
          %v603 = vpop.f32.mrb[0].mxu0
          %v604 = vadd.f32 0.0, %v603
          %v605 = vpop.f32.mrb[0].mxu0
          %606 = vdwg.mxu0
          %v607 = vadd.f32 %v515, %v601
          %v608 = vadd.f32 %v516, %v604
          %609 = vst [vmem:[#allocation2] sm:$0xff] %v607
          %610 = vst [vmem:[#allocation2 + $0x8] sm:$0xff] %v608
          %p611 = scmp.eq.s32.totalorder %s47, 1
          // Predicated region
          $region53: #{tpu_custom_call.1} parent=47 // pred_check
            %p612 = pneg %p611
          $region54: #{tpu_custom_call.1} parent=47 // pred_check_branch
            %614 = sbr.rel (%p612) target = $region56
          $region55: #{tpu_custom_call.1} parent=47 // pred_region
            %v615 = vld [vmem:[#allocation2] sm:$0xff]
            %v616 = vld [vmem:[#allocation2 + $0x8] sm:$0xff]
            %617 = vst [vmem:[%s315] sm:$0xff] %v615
            %618 = vst [vmem:[%s315 + $0x8] sm:$0xff] %v616
          $region56: #{tpu_custom_call.1} parent=47 // pred_fallthru
            _
        $region48: #{tpu_custom_call.1} parent=31 // pred_fallthru
          _
        %s619 = sand.u32 %s152, 1
        %s620 = scalar_lea.sflag [#allocation10], %s619
        %s621 = sand.u32 %s152, 1
        %s622 = smul.addr %s621, 16
        %s623 = scalar_lea.vmem [#allocation14], %s622
        // Predicated region
        $region57: #{tpu_custom_call.1} parent=31 // pred_check
          %p624 = pneg %p162
        $region58: #{tpu_custom_call.1} parent=31 // pred_check_branch
          %626 = sbr.rel (%p624) target = $region60
        $region59: #{tpu_custom_call.1} parent=31 // pred_region
          %s627 = sld [smem:[#allocation6 + %s46]]
          %s628 = smul.u32 2, %s627
          %s630 = ssub.s32 256, 256
          %631 = vsyncadd %s620, %s630
          %s632 = smul.addr %s628, 128
          %s633 = scalar_lea.hbm %s7, %s632
          %s634 = sshll.u32 %s623, 4
          %s635 = int_to_ptr.vmem [resolvable:$true] %s634
          %640 = dma.vmem_to_hbm [thread:$0]  %s635, 256, %s633, %s620, 128, 128, 8
        $region60: #{tpu_custom_call.1} parent=31 // pred_fallthru
          _
      $region32: #{tpu_custom_call.1} parent=5 // pred_fallthru
        _
      %p641 = scmp.le.s32.totalorder 2, %s37
      // Predicated region
      $region61: #{tpu_custom_call.1} parent=5 // pred_check
        %p642 = pneg %p641
      $region62: #{tpu_custom_call.1} parent=5 // pred_check_branch
        %644 = sbr.rel (%p642) target = $region64
      $region63: #{tpu_custom_call.1} parent=5 // pred_region
        %s645 = ssub.s32 %s37, 2
        // Predicated region
        $region65: #{tpu_custom_call.1} parent=63 // pred_check
          %p646 = pneg %p168
        $region66: #{tpu_custom_call.1} parent=63 // pred_check_branch
          %648 = sbr.rel (%p646) target = $region68
        $region67: #{tpu_custom_call.1} parent=63 // pred_region
          %s649 = sand.u32 %s153, 1
          %s650 = scalar_lea.sflag [#allocation10], %s649
          %s651 = sand.u32 %s153, 1
          %s652 = smul.addr %s651, 16
          %s653 = scalar_lea.vmem [#allocation14], %s652
          %654 = dma.done %s650, 256
        $region68: #{tpu_custom_call.1} parent=63 // pred_fallthru
          _
      $region64: #{tpu_custom_call.1} parent=5 // pred_fallthru
        _
    $region6: #{tpu_custom_call.1} parent=1 // loop_footer
      %s41 = sadd.s32 1, %s37
    $region7: #{tpu_custom_call.1} parent=1 // loop_footer_branch
      %36 = sbr.rel target = $region3
    $region8: #{tpu_custom_call.1} parent=1 // loop_exit
      _
    %655 = vsyncpa [#allocation9], 1
    %s656 = scalar_lea.sflag [#allocation9], 1
    %657 = vsyncpa %s656, 1
    %658 = vsyncpa [#allocation12], 1
    %s659 = scalar_lea.sflag [#allocation12], 1
    %660 = vsyncpa %s659, 1
    %661 = vsyncpa [#allocation10], 1
    %s662 = scalar_lea.sflag [#allocation10], 1
    %663 = vsyncpa %s662, 1

// kernel: tpu_custom_call.1
$region0: #{tpu_custom_call.1}
  #allocation0 [shape = 'u32[]', space=smem, size = 0x4, offset = 0x4, fixed_abs, tag = 'smem constant byte address 0x4 - core index']
  #allocation1 [shape = 'u32[144,128]{1,0:T(1,128)}', space=vmem, size = 0x12000, scoped, tag = 'internal scratch']
  #allocation2 [shape = 'f32[16,128]{1,0:T(8,128)}', space=vmem, size = 0x2000, scoped, tag = 'scratch operand']
  #allocation3 [shape = 's32[1]{0}', space=sflag, size = 0x4, scoped, tag = 'scoped memory for tpu_custom_call.1']
  #allocation4 [shape = 'u8[512]{0}', space=smem, size = 0x200, scoped, tag = 'prefetched SMEM operand 0']
  #allocation5 [shape = 'u8[512]{0}', space=smem, size = 0x200, scoped, tag = 'prefetched SMEM operand 1']
  #allocation6 [shape = 'u8[512]{0}', space=smem, size = 0x200, scoped, tag = 'prefetched SMEM operand 2']
  #allocation7 [shape = 's32[1]{0:T(128)S(6)}', space=smem, size = 0x200, scoped, tag = 'prefetched SMEM operand 3']
  %s0 = inlined_call_operand.vmem [shape: s32[8], index: 0, kind: input, shape index: {}]
  %s1 = inlined_call_operand.vmem [shape: s32[8], index: 1, kind: input, shape index: {}]
  %s2 = inlined_call_operand.vmem [shape: s32[8], index: 2, kind: input, shape index: {}]
  %s3 = inlined_call_operand.<no memory space> [shape: s32[1], index: 3, kind: input, shape index: {}]
  %s4 = inlined_call_operand.hbm [shape: bf16[128,128], index: 4, kind: input, shape index: {}]
  %s5 = inlined_call_operand.hbm [shape: bf16[8,128,512], index: 5, kind: input, shape index: {}]
  %s6 = inlined_call_operand.hbm [shape: bf16[8,256,128], index: 6, kind: input, shape index: {}]
  %s7 = inlined_call_operand.hbm [shape: f32[144,128], index: 7, kind: output, shape index: {}]
  %s8 = sld [smem:[#allocation0]]
  $region69: #{tpu_custom_call.1} parent=0
    _
  %s10 = ssub.s32 1, %s8
  %s11 = scalar_select 0, %s10, %s8
  %s12 = sshll.u32 %s0, 4
  %s13 = int_to_ptr.vmem [resolvable:$true] %s12
  %15 = dma.vmem_to_smem %s13, 16, [#allocation4], [#allocation3]
  %s16 = sshll.u32 %s1, 4
  %s17 = int_to_ptr.vmem [resolvable:$true] %s16
  %19 = dma.vmem_to_smem %s17, 16, [#allocation5], [#allocation3]
  %s20 = sshll.u32 %s2, 4
  %s21 = int_to_ptr.vmem [resolvable:$true] %s20
  %23 = dma.vmem_to_smem %s21, 16, [#allocation6], [#allocation3]
  %24 = sst [smem:[#allocation7]] %s3
  %25 = dma.done [#allocation3], 48
  %26 = sfence
  $region1: #{tpu_custom_call.1} parent=0
    #allocation8 [shape = 'u8[8192]{0}', space=vmem, size = 0x2000, scoped, tag = 'input window, operand 4']
    #allocation9 [shape = 's32[2]{0}', space=sflag, size = 0x8, scoped, tag = 'scoped memory for tpu_custom_call.1']
    #allocation10 [shape = 's32[2]{0}', space=sflag, size = 0x8, scoped, tag = 'scoped memory for tpu_custom_call.1']
    #allocation11 [shape = 'u8[131072]{0}', space=vmem, size = 0x20000, scoped, tag = 'input window, operand 5']
    #allocation12 [shape = 's32[2]{0}', space=sflag, size = 0x8, scoped, tag = 'scoped memory for tpu_custom_call.1']
    #allocation13 [shape = 'u8[65536]{0}', space=vmem, size = 0x10000, scoped, tag = 'input window, operand 6']
    #allocation14 [shape = 'u8[16384]{0}', space=vmem, size = 0x4000, scoped, tag = 'output window, operand 0']
    %27 = vsyncpa [#allocation9], 0
    %s28 = scalar_lea.sflag [#allocation9], 1
    %29 = vsyncpa %s28, 0
    %30 = vsyncpa [#allocation12], 0
    %s31 = scalar_lea.sflag [#allocation12], 1
    %32 = vsyncpa %s31, 0
    %33 = vsyncpa [#allocation10], 0
    %s34 = scalar_lea.sflag [#allocation10], 1
    %35 = vsyncpa %s34, 0
    loop: start=0, step=1, limit=18
    $region2: #{tpu_custom_call.1} parent=1 // loop_pre_header
      _
    $region3: #{tpu_custom_call.1} parent=1 // loop_header
      %s37 = sphi 0, %s41
      %p38 = scmp.ge.s32.totalorder %s37, 18
      %s44 = sphi 0, %s56
      %s45 = sphi 0, %s52
      %s46 = sphi 0, %s44
      %s47 = sphi 0, %s45
      %s48 = sphi 0, %s46
      %s49 = sphi 0, %s47
      %s61 = sphi 0, %s63
      %s64 = sphi 0, %s61
      %s65 = sphi 0, %s64
      %s81 = sphi 0, %s65
      %s91 = sphi 0, %s93
      %s94 = sphi 0, %s91
      %s95 = sphi 0, %s94
      %s111 = sphi 0, %s95
      %s121 = sphi 0, %s123
      %s124 = sphi 0, %s121
      %s125 = sphi 0, %s124
      %s141 = sphi 0, %s125
      %s149 = sphi 0, %s151
      %s152 = sphi 0, %s149
      %s153 = sphi 0, %s152
      %s169 = sphi 0, %s153
    $region4: #{tpu_custom_call.1} parent=1 // loop_header_branch
      %40 = sbr.rel (%p38) target = $region8
    $region5: #{tpu_custom_call.1} parent=1 // loop_body
      %s42 = ssub.s32 %s37, 1
      %s43 = ssub.s32 %s37, 2
      %s50 = sadd.s32 1, %s45
      %p51 = scmp.ge.s32.totalorder %s50, 2
      %s52 = scalar_select %p51, 0, %s50
      %s53 = sadd.s32 1, %s44
      %s54 = scalar_select %p51, %s53, %s44
      %p55 = scmp.ge.s32.totalorder %s54, 8
      %s56 = scalar_select %p55, 0, %s54
      %s57 = sld [smem:[#allocation5 + %s44]]
      %s58 = sld [smem:[#allocation5 + %s56]]
      %s59 = ssub.s32 %s57, %s58
      %p60 = scmp.eq.s32.totalorder %s59, 0
      %s62 = sadd.s32 %s61, 1
      %s63 = scalar_select %p60, %s61, %s62
      %p66 = pneg %p60
      %p67 = scmp.eq.s32.totalorder %s37, 15
      %p68 = por %p66, %p67
      %p69 = scmp.ne.s32.totalorder %s61, %s64
      %p70 = scmp.eq.s32.totalorder %s37, 0
      %p71 = por %p69, %p70
      %p72 = scmp.ne.s32.totalorder %s61, %s64
      %p73 = scmp.eq.s32.totalorder %s42, 15
      %p74 = por %p72, %p73
      %p75 = scmp.ne.s32.totalorder %s64, %s65
      %p76 = scmp.eq.s32.totalorder %s42, 0
      %p77 = por %p75, %p76
      %p78 = scmp.ne.s32.totalorder %s64, %s65
      %p79 = scmp.eq.s32.totalorder %s43, 15
      %p80 = por %p78, %p79
      %p82 = scmp.ne.s32.totalorder %s65, %s81
      %p83 = scmp.eq.s32.totalorder %s43, 0
      %p84 = por %p82, %p83
      %s85 = sld [smem:[#allocation4 + %s44]]
      %s86 = sld [smem:[#allocation4 + %s56]]
      %s87 = ssub.s32 %s85, %s86
      %s88 = ssub.s32 %s45, %s52
      %s89 = sor.u32 %s87, %s88
      %p90 = scmp.eq.s32.totalorder %s89, 0
      %s92 = sadd.s32 %s91, 1
      %s93 = scalar_select %p90, %s91, %s92
      %p96 = pneg %p90
      %p97 = scmp.eq.s32.totalorder %s37, 15
      %p98 = por %p96, %p97
      %p99 = scmp.ne.s32.totalorder %s91, %s94
      %p100 = scmp.eq.s32.totalorder %s37, 0
      %p101 = por %p99, %p100
      %p102 = scmp.ne.s32.totalorder %s91, %s94
      %p103 = scmp.eq.s32.totalorder %s42, 15
      %p104 = por %p102, %p103
      %p105 = scmp.ne.s32.totalorder %s94, %s95
      %p106 = scmp.eq.s32.totalorder %s42, 0
      %p107 = por %p105, %p106
      %p108 = scmp.ne.s32.totalorder %s94, %s95
      %p109 = scmp.eq.s32.totalorder %s43, 15
      %p110 = por %p108, %p109
      %p112 = scmp.ne.s32.totalorder %s95, %s111
      %p113 = scmp.eq.s32.totalorder %s43, 0
      %p114 = por %p112, %p113
      %s115 = sld [smem:[#allocation4 + %s44]]
      %s116 = sld [smem:[#allocation4 + %s56]]
      %s117 = ssub.s32 %s115, %s116
      %s118 = ssub.s32 %s45, %s52
      %s119 = sor.u32 %s117, %s118
      %p120 = scmp.eq.s32.totalorder %s119, 0
      %s122 = sadd.s32 %s121, 1
      %s123 = scalar_select %p120, %s121, %s122
      %p126 = pneg %p120
      %p127 = scmp.eq.s32.totalorder %s37, 15
      %p128 = por %p126, %p127
      %p129 = scmp.ne.s32.totalorder %s121, %s124
      %p130 = scmp.eq.s32.totalorder %s37, 0
      %p131 = por %p129, %p130
      %p132 = scmp.ne.s32.totalorder %s121, %s124
      %p133 = scmp.eq.s32.totalorder %s42, 15
      %p134 = por %p132, %p133
      %p135 = scmp.ne.s32.totalorder %s124, %s125
      %p136 = scmp.eq.s32.totalorder %s42, 0
      %p137 = por %p135, %p136
      %p138 = scmp.ne.s32.totalorder %s124, %s125
      %p139 = scmp.eq.s32.totalorder %s43, 15
      %p140 = por %p138, %p139
      %p142 = scmp.ne.s32.totalorder %s125, %s141
      %p143 = scmp.eq.s32.totalorder %s43, 0
      %p144 = por %p142, %p143
      %s145 = sld [smem:[#allocation6 + %s44]]
      %s146 = sld [smem:[#allocation6 + %s56]]
      %s147 = ssub.s32 %s145, %s146
      %p148 = scmp.eq.s32.totalorder %s147, 0
      %s150 = sadd.s32 %s149, 1
      %s151 = scalar_select %p148, %s149, %s150
      %p154 = pneg %p148
      %p155 = scmp.eq.s32.totalorder %s37, 15
      %p156 = por %p154, %p155
      %p157 = scmp.ne.s32.totalorder %s149, %s152
      %p158 = scmp.eq.s32.totalorder %s37, 0
      %p159 = por %p157, %p158
      %p160 = scmp.ne.s32.totalorder %s149, %s152
      %p161 = scmp.eq.s32.totalorder %s42, 15
      %p162 = por %p160, %p161
      %p163 = scmp.ne.s32.totalorder %s152, %s153
      %p164 = scmp.eq.s32.totalorder %s42, 0
      %p165 = por %p163, %p164
      %p166 = scmp.ne.s32.totalorder %s152, %s153
      %p167 = scmp.eq.s32.totalorder %s43, 15
      %p168 = por %p166, %p167
      %p170 = scmp.ne.s32.totalorder %s153, %s169
      %p171 = scmp.eq.s32.totalorder %s43, 0
      %p172 = por %p170, %p171
      %p173 = scmp.le.s32.totalorder 1, %s37
      %p174 = scmp.lt.s32.totalorder %s37, 17
      %p175 = pnand %p173, %p174
      %p176 = pneg %p175
      // Predicated region
      $region9: #{tpu_custom_call.1} parent=5 // pred_check
        _
      $region10: #{tpu_custom_call.1} parent=5 // pred_check_branch
        %178 = sbr.rel (%p175) target = $region12
      $region11: #{tpu_custom_call.1} parent=5 // pred_region
        %s179 = ssub.s32 %s37, 1
      $region12: #{tpu_custom_call.1} parent=5 // pred_fallthru
        _
      %p180 = scmp.lt.s32.totalorder %s37, 16
      // Predicated region
      $region13: #{tpu_custom_call.1} parent=5 // pred_check
        %p181 = pneg %p180
      $region14: #{tpu_custom_call.1} parent=5 // pred_check_branch
        %183 = sbr.rel (%p181) target = $region16
      $region15: #{tpu_custom_call.1} parent=5 // pred_region
        // Predicated region
        $region17: #{tpu_custom_call.1} parent=15 // pred_check
          %p184 = pneg %p71
        $region18: #{tpu_custom_call.1} parent=15 // pred_check_branch
          %186 = sbr.rel (%p184) target = $region20
        $region19: #{tpu_custom_call.1} parent=15 // pred_region
          %s187 = sand.u32 %s61, 1
          %s188 = scalar_lea.sflag [#allocation9], %s187
          %s189 = sand.u32 %s61, 1
          %s190 = smul.addr %s189, 8
          %s191 = scalar_lea.vmem [#allocation8], %s190
          %s192 = sld [smem:[#allocation5 + %s44]]
          %s193 = smul.u32 2, %s192
          %s195 = ssub.s32 128, 128
          %196 = vsyncadd %s188, %s195
          %s197 = smul.addr %s193, 64
          %s198 = scalar_lea.hbm %s4, %s197
          %s199 = sshll.u32 %s191, 4
          %s200 = int_to_ptr.vmem [resolvable:$true] %s199
          %205 = dma.hbm_to_vmem [thread:$0]  %s198, 128, %s200, %s188, 64, 64, 4
        $region20: #{tpu_custom_call.1} parent=15 // pred_fallthru
          _
        // Predicated region
        $region21: #{tpu_custom_call.1} parent=15 // pred_check
          %p206 = pneg %p101
        $region22: #{tpu_custom_call.1} parent=15 // pred_check_branch
          %208 = sbr.rel (%p206) target = $region24
        $region23: #{tpu_custom_call.1} parent=15 // pred_region
          %s209 = sand.u32 %s37, 1
          %s210 = scalar_lea.sflag [#allocation12], %s209
          %s211 = sand.u32 %s91, 1
          %s212 = smul.addr %s211, 128
          %s213 = scalar_lea.vmem [#allocation11], %s212
          %s214 = sld [smem:[#allocation4 + %s44]]
          %s215 = smul.u32 2, %s45
          %s217 = ssub.s32 2048, 2048
          %218 = vsyncadd %s210, %s217
          %s219 = smul.addr %s214, 64
          %s220 = sadd.s32 %s215, %s219
          %s221 = smul.addr %s220, 64
          %s222 = scalar_lea.hbm %s5, %s221
          %s223 = sshll.u32 %s213, 4
          %s224 = int_to_ptr.vmem [resolvable:$true] %s223
          %229 = dma.hbm_to_vmem [thread:$0]  %s222, 2048, %s224, %s210, 256, 128, 8
        $region24: #{tpu_custom_call.1} parent=15 // pred_fallthru
          _
        // Predicated region
        $region25: #{tpu_custom_call.1} parent=15 // pred_check
          %p230 = pneg %p131
        $region26: #{tpu_custom_call.1} parent=15 // pred_check_branch
          %232 = sbr.rel (%p230) target = $region28
        $region27: #{tpu_custom_call.1} parent=15 // pred_region
          %s233 = sand.u32 %s37, 1
          %s234 = scalar_lea.sflag [#allocation12], %s233
          %s235 = sand.u32 %s121, 1
          %s236 = smul.addr %s235, 64
          %s237 = scalar_lea.vmem [#allocation13], %s236
          %s238 = sld [smem:[#allocation4 + %s44]]
          %s239 = smul.u32 16, %s45
          %s241 = ssub.s32 1024, 1024
          %242 = vsyncadd %s234, %s241
          %s243 = smul.addr %s238, 32
          %s244 = sadd.s32 %s239, %s243
          %s245 = smul.addr %s244, 64
          %s246 = scalar_lea.hbm %s6, %s245
          %s247 = sshll.u32 %s237, 4
          %s248 = int_to_ptr.vmem [resolvable:$true] %s247
          %253 = dma.hbm_to_vmem [thread:$0]  %s246, 1024, %s248, %s234, 64, 64, 4
        $region28: #{tpu_custom_call.1} parent=15 // pred_fallthru
          _
      $region16: #{tpu_custom_call.1} parent=5 // pred_fallthru
        _
      %p254 = scmp.le.s32.totalorder 1, %s37
      %p255 = scmp.lt.s32.totalorder %s37, 17
      %p256 = pnand %p254, %p255
      %p257 = pneg %p256
      // Predicated region
      $region29: #{tpu_custom_call.1} parent=5 // pred_check
        _
      $region30: #{tpu_custom_call.1} parent=5 // pred_check_branch
        %259 = sbr.rel (%p256) target = $region32
      $region31: #{tpu_custom_call.1} parent=5 // pred_region
        %s260 = ssub.s32 %s37, 1
        %s261 = sand.u32 %s64, 1
        %s262 = scalar_lea.sflag [#allocation9], %s261
        %s263 = sand.u32 %s64, 1
        %s264 = smul.addr %s263, 8
        %s265 = scalar_lea.vmem [#allocation8], %s264
        // Predicated region
        $region33: #{tpu_custom_call.1} parent=31 // pred_check
          %p266 = pneg %p77
        $region34: #{tpu_custom_call.1} parent=31 // pred_check_branch
          %268 = sbr.rel (%p266) target = $region36
        $region35: #{tpu_custom_call.1} parent=31 // pred_region
          %269 = dma.done %s262, 128
        $region36: #{tpu_custom_call.1} parent=31 // pred_fallthru
          _
        %s270 = sand.u32 %s42, 1
        %s271 = scalar_lea.sflag [#allocation12], %s270
        %s272 = sand.u32 %s94, 1
        %s273 = smul.addr %s272, 128
        %s274 = scalar_lea.vmem [#allocation11], %s273
        // Predicated region
        $region37: #{tpu_custom_call.1} parent=31 // pred_check
          %p275 = pneg %p107
        $region38: #{tpu_custom_call.1} parent=31 // pred_check_branch
          %277 = sbr.rel (%p275) target = $region40
        $region39: #{tpu_custom_call.1} parent=31 // pred_region
          %278 = dma.done %s271, 2048
        $region40: #{tpu_custom_call.1} parent=31 // pred_fallthru
          _
        %s279 = sand.u32 %s42, 1
        %s280 = scalar_lea.sflag [#allocation12], %s279
        %s281 = sand.u32 %s124, 1
        %s282 = smul.addr %s281, 64
        %s283 = scalar_lea.vmem [#allocation13], %s282
        // Predicated region
        $region41: #{tpu_custom_call.1} parent=31 // pred_check
          %p284 = pneg %p137
        $region42: #{tpu_custom_call.1} parent=31 // pred_check_branch
          %286 = sbr.rel (%p284) target = $region44
        $region43: #{tpu_custom_call.1} parent=31 // pred_region
          %287 = dma.done %s280, 1024
        $region44: #{tpu_custom_call.1} parent=31 // pred_fallthru
          _
        %s288 = sand.u32 %s64, 1
        %s289 = scalar_lea.sflag [#allocation9], %s288
        %s290 = sand.u32 %s64, 1
        %s291 = smul.addr %s290, 8
        %s292 = scalar_lea.vmem [#allocation8], %s291
        %p293 = pneg %p77
        %p294 = pneg %p74
        %s295 = sand.u32 %s42, 1
        %s296 = scalar_lea.sflag [#allocation12], %s295
        %s297 = sand.u32 %s94, 1
        %s298 = smul.addr %s297, 128
        %s299 = scalar_lea.vmem [#allocation11], %s298
        %p300 = pneg %p107
        %p301 = pneg %p104
        %s302 = sand.u32 %s42, 1
        %s303 = scalar_lea.sflag [#allocation12], %s302
        %s304 = sand.u32 %s124, 1
        %s305 = smul.addr %s304, 64
        %s306 = scalar_lea.vmem [#allocation13], %s305
        %p307 = pneg %p137
        %p308 = pneg %p134
        %p309 = pneg %p165
        %p310 = pneg %p162
        %s311 = sand.u32 %s152, 1
        %s312 = scalar_lea.sflag [#allocation10], %s311
        %s313 = sand.u32 %s152, 1
        %s314 = smul.addr %s313, 16
        %s315 = scalar_lea.vmem [#allocation14], %s314
        %s316 = sld [smem:[#allocation5 + %s46]]
        %s317 = smul.u32 2, %s316
        %s318 = sld [smem:[#allocation4 + %s46]]
        %s319 = smul.u32 2, %s47
        %s320 = sld [smem:[#allocation4 + %s46]]
        %s321 = smul.u32 16, %s47
        %s322 = sld [smem:[#allocation6 + %s46]]
        %s323 = smul.u32 2, %s322
        %s325 = sld [smem:[#allocation7]]
        %p326 = scmp.lt.s32.totalorder %s46, %s325
        // Predicated region
        $region45: #{tpu_custom_call.1} parent=31 // pred_check
          %p327 = pneg %p326
        $region46: #{tpu_custom_call.1} parent=31 // pred_check_branch
          %329 = sbr.rel (%p327) target = $region48
        $region47: #{tpu_custom_call.1} parent=31 // pred_region
          %p330 = scmp.eq.s32.totalorder %s47, 0
          // Predicated region
          $region49: #{tpu_custom_call.1} parent=47 // pred_check
            %p331 = pneg %p330
          $region50: #{tpu_custom_call.1} parent=47 // pred_check_branch
            %333 = sbr.rel (%p331) target = $region52
          $region51: #{tpu_custom_call.1} parent=47 // pred_region
            %334 = vst [vmem:[#allocation2] sm:$0xff] 0.0
            %335 = vst [vmem:[#allocation2 + $0x8] sm:$0xff] 0.0
          $region52: #{tpu_custom_call.1} parent=47 // pred_fallthru
            _
          %v336 = vld [vmem:[%s265] sm:$0xf]
          %v337 = vld [vmem:[%s265 + $0x4] sm:$0xf]
          %v338 = vld [vmem:[%s274] sm:$0xff]
          %v339 = vld [vmem:[%s274 + $0x8] sm:$0xff]
          %v340 = vld [vmem:[%s274 + $0x10] sm:$0xff]
          %v341 = vld [vmem:[%s274 + $0x18] sm:$0xff]
          %v342 = vld [vmem:[%s274 + $0x20] sm:$0xff]
          %v343 = vld [vmem:[%s274 + $0x28] sm:$0xff]
          %v344 = vld [vmem:[%s274 + $0x30] sm:$0xff]
          %v345 = vld [vmem:[%s274 + $0x38] sm:$0xff]
          %v346 = vld [vmem:[%s274 + $0x40] sm:$0xff]
          %v347 = vld [vmem:[%s274 + $0x48] sm:$0xff]
          %v348 = vld [vmem:[%s274 + $0x50] sm:$0xff]
          %v349 = vld [vmem:[%s274 + $0x58] sm:$0xff]
          %v350 = vld [vmem:[%s274 + $0x60] sm:$0xff]
          %v351 = vld [vmem:[%s274 + $0x68] sm:$0xff]
          %v352 = vld [vmem:[%s274 + $0x70] sm:$0xff]
          %v353 = vld [vmem:[%s274 + $0x78] sm:$0xff]
          %v354 = vld [vmem:[%s283] sm:$0xf]
          %v355 = vld [vmem:[%s283 + $0x4] sm:$0xf]
          %v356 = vld [vmem:[%s283 + $0x8] sm:$0xf]
          %v357 = vld [vmem:[%s283 + $0xc] sm:$0xf]
          %v358 = vld [vmem:[%s283 + $0x10] sm:$0xf]
          %v359 = vld [vmem:[%s283 + $0x14] sm:$0xf]
          %v360 = vld [vmem:[%s283 + $0x18] sm:$0xf]
          %v361 = vld [vmem:[%s283 + $0x1c] sm:$0xf]
          %v362 = vld [vmem:[%s283 + $0x20] sm:$0xf]
          %v363 = vld [vmem:[%s283 + $0x24] sm:$0xf]
          %v364 = vld [vmem:[%s283 + $0x28] sm:$0xf]
          %v365 = vld [vmem:[%s283 + $0x2c] sm:$0xf]
          %v366 = vld [vmem:[%s283 + $0x30] sm:$0xf]
          %v367 = vld [vmem:[%s283 + $0x34] sm:$0xf]
          %v368 = vld [vmem:[%s283 + $0x38] sm:$0xf]
          %v369 = vld [vmem:[%s283 + $0x3c] sm:$0xf]
          %v372 = vunpack.c.l.b16 %v336
          %v373 = vunpack.c.l.b16 %v337
          %v374 = vpack.c.b16 %v373, %v372
          %v392 = vunpack.c.l.b16 %v338
          %v393 = vunpack.c.h.b16 %v338
          %v394 = vunpack.c.l.b16 %v339
          %v395 = vunpack.c.h.b16 %v339
          %v396 = vunpack.c.l.b16 %v340
          %v397 = vunpack.c.h.b16 %v340
          %v398 = vunpack.c.l.b16 %v341
          %v399 = vunpack.c.h.b16 %v341
          %v400 = vunpack.c.l.b16 %v342
          %v401 = vunpack.c.h.b16 %v342
          %v402 = vunpack.c.l.b16 %v343
          %v403 = vunpack.c.h.b16 %v343
          %v404 = vunpack.c.l.b16 %v344
          %v405 = vunpack.c.h.b16 %v344
          %v406 = vunpack.c.l.b16 %v345
          %v407 = vunpack.c.h.b16 %v345
          %v408 = vunpack.c.l.b16 %v346
          %v409 = vunpack.c.h.b16 %v346
          %v410 = vunpack.c.l.b16 %v347
          %v411 = vunpack.c.h.b16 %v347
          %v412 = vunpack.c.l.b16 %v348
          %v413 = vunpack.c.h.b16 %v348
          %v414 = vunpack.c.l.b16 %v349
          %v415 = vunpack.c.h.b16 %v349
          %v416 = vunpack.c.l.b16 %v350
          %v417 = vunpack.c.h.b16 %v350
          %v418 = vunpack.c.l.b16 %v351
          %v419 = vunpack.c.h.b16 %v351
          %v420 = vunpack.c.l.b16 %v352
          %v421 = vunpack.c.h.b16 %v352
          %v422 = vunpack.c.l.b16 %v353
          %v423 = vunpack.c.h.b16 %v353
          %v424 = vpack.c.b16 %v394, %v392
          %v425 = vpack.c.b16 %v395, %v393
          %v426 = vpack.c.b16 %v398, %v396
          %v427 = vpack.c.b16 %v399, %v397
          %v428 = vpack.c.b16 %v402, %v400
          %v429 = vpack.c.b16 %v403, %v401
          %v430 = vpack.c.b16 %v406, %v404
          %v431 = vpack.c.b16 %v407, %v405
          %v432 = vpack.c.b16 %v410, %v408
          %v433 = vpack.c.b16 %v411, %v409
          %v434 = vpack.c.b16 %v414, %v412
          %v435 = vpack.c.b16 %v415, %v413
          %v436 = vpack.c.b16 %v418, %v416
          %v437 = vpack.c.b16 %v419, %v417
          %v438 = vpack.c.b16 %v422, %v420
          %v439 = vpack.c.b16 %v423, %v421
          %456 = vmatprep.subr.bf16.mxu0 %v425
          %457 = vmatpush1.bf16.msra.mxu0 %v424
          %458 = vmatprep.subr.bf16.mxu0 %v427
          %459 = vmatpush1.bf16.msra.mxu0 %v426
          %460 = vmatprep.subr.bf16.mxu0 %v429
          %461 = vmatpush1.bf16.msra.mxu0 %v428
          %462 = vmatprep.subr.bf16.mxu0 %v431
          %463 = vmatpush1.bf16.msra.mxu0 %v430
          %464 = vmatprep.subr.bf16.mxu0 %v433
          %465 = vmatpush1.bf16.msra.mxu0 %v432
          %466 = vmatprep.subr.bf16.mxu0 %v435
          %467 = vmatpush1.bf16.msra.mxu0 %v434
          %468 = vmatprep.subr.bf16.mxu0 %v437
          %469 = vmatpush1.bf16.msra.mxu0 %v436
          %470 = vmatprep.subr.bf16.mxu0 %v439
          %471 = vmatpush1.bf16.msra.mxu0 %v438
          %472 = vmatprep.subr.bf16.mxu0 0
          %473 = vmatpush1.bf16.msra.mxu0 0
          %474 = vmatprep.subr.bf16.mxu0 0
          %475 = vmatpush1.bf16.msra.mxu0 0
          %476 = vmatprep.subr.bf16.mxu0 0
          %477 = vmatpush1.bf16.msra.mxu0 0
          %478 = vmatprep.subr.bf16.mxu0 0
          %479 = vmatpush1.bf16.msra.mxu0 0
          %480 = vmatprep.subr.bf16.mxu0 0
          %481 = vmatpush1.bf16.msra.mxu0 0
          %482 = vmatprep.subr.bf16.mxu0 0
          %483 = vmatpush1.bf16.msra.mxu0 0
          %484 = vmatprep.subr.bf16.mxu0 0
          %485 = vmatpush1.bf16.msra.mxu0 0
          %486 = vmatprep.subr.bf16.mxu0 0
          %487 = vmatpush1.bf16.msra.mxu0 0
          %488 = vmatprep.mubr.bf16.mxu0 0
          %489 = vmatmul.mubr.bf16.gmra.mrb[0].mxu0 %v374
          %v490 = vpop.f32.mrb[0].mxu0
          %v491 = vadd.f32 0.0, %v490
          %v492 = vpop.f32.mrb[0].mxu0
          %v493 = vadd.f32 0.0, %v492
          %v494 = vpop.f32.mrb[0].mxu0
          %v495 = vadd.f32 0.0, %v494
          %v496 = vpop.f32.mrb[0].mxu0
          %v497 = vadd.f32 0.0, %v496
          %498 = vdwg.mxu0
          %v499 = vxor.u32 %v491, 2147483648
          %v500 = vxor.u32 %v495, 2147483648
          %v501 = vmul.f32 %v499, 1.442695
          %v502 = vpow.pop %v501
          %v503 = vmul.f32 %v500, 1.442695
          %v504 = vpow.pop %v503
          %v505 = vadd.f32 %v502, 1.0
          %v506 = vadd.f32 %v504, 1.0
          %v507 = vrcp.pop %v505
          %v508 = vmul.f32 1.0, %v507
          %v509 = vrcp.pop %v506
          %v510 = vmul.f32 1.0, %v509
          %v511 = vmul.f32 %v491, %v508
          %v512 = vmul.f32 %v495, %v510
          %v513 = vmul.f32 %v511, %v493
          %v514 = vmul.f32 %v512, %v497
          %v515 = vld [vmem:[#allocation2] sm:$0xff]
          %v516 = vld [vmem:[#allocation2 + $0x8] sm:$0xff]
          %v517 = vpack.c.bf16 %v514, %v513
          %v534 = vunpack.c.l.b16 %v354
          %v535 = vunpack.c.l.b16 %v355
          %v536 = vunpack.c.l.b16 %v356
          %v537 = vunpack.c.l.b16 %v357
          %v538 = vunpack.c.l.b16 %v358
          %v539 = vunpack.c.l.b16 %v359
          %v540 = vunpack.c.l.b16 %v360
          %v541 = vunpack.c.l.b16 %v361
          %v542 = vunpack.c.l.b16 %v362
          %v543 = vunpack.c.l.b16 %v363
          %v544 = vunpack.c.l.b16 %v364
          %v545 = vunpack.c.l.b16 %v365
          %v546 = vunpack.c.l.b16 %v366
          %v547 = vunpack.c.l.b16 %v367
          %v548 = vunpack.c.l.b16 %v368
          %v549 = vunpack.c.l.b16 %v369
          %v550 = vpack.c.b16 %v535, %v534
          %v551 = vpack.c.b16 %v537, %v536
          %v552 = vpack.c.b16 %v539, %v538
          %v553 = vpack.c.b16 %v541, %v540
          %v554 = vpack.c.b16 %v543, %v542
          %v555 = vpack.c.b16 %v545, %v544
          %v556 = vpack.c.b16 %v547, %v546
          %v557 = vpack.c.b16 %v549, %v548
          %566 = vmatprep.subr.bf16.mxu0 0
          %567 = vmatpush1.bf16.msra.mxu0 %v550
          %568 = vmatprep.subr.bf16.mxu0 0
          %569 = vmatpush1.bf16.msra.mxu0 %v551
          %570 = vmatprep.subr.bf16.mxu0 0
          %571 = vmatpush1.bf16.msra.mxu0 %v552
          %572 = vmatprep.subr.bf16.mxu0 0
          %573 = vmatpush1.bf16.msra.mxu0 %v553
          %574 = vmatprep.subr.bf16.mxu0 0
          %575 = vmatpush1.bf16.msra.mxu0 %v554
          %576 = vmatprep.subr.bf16.mxu0 0
          %577 = vmatpush1.bf16.msra.mxu0 %v555
          %578 = vmatprep.subr.bf16.mxu0 0
          %579 = vmatpush1.bf16.msra.mxu0 %v556
          %580 = vmatprep.subr.bf16.mxu0 0
          %581 = vmatpush1.bf16.msra.mxu0 %v557
          %582 = vmatprep.subr.bf16.mxu0 0
          %583 = vmatpush1.bf16.msra.mxu0 0
          %584 = vmatprep.subr.bf16.mxu0 0
          %585 = vmatpush1.bf16.msra.mxu0 0
          %586 = vmatprep.subr.bf16.mxu0 0
          %587 = vmatpush1.bf16.msra.mxu0 0
          %588 = vmatprep.subr.bf16.mxu0 0
          %589 = vmatpush1.bf16.msra.mxu0 0
          %590 = vmatprep.subr.bf16.mxu0 0
          %591 = vmatpush1.bf16.msra.mxu0 0
          %592 = vmatprep.subr.bf16.mxu0 0
          %593 = vmatpush1.bf16.msra.mxu0 0
          %594 = vmatprep.subr.bf16.mxu0 0
          %595 = vmatpush1.bf16.msra.mxu0 0
          %596 = vmatprep.subr.bf16.mxu0 0
          %597 = vmatpush1.bf16.msra.mxu0 0
          %598 = vmatprep.mubr.bf16.mxu0 0
          %599 = vmatmul.mubr.bf16.gmra.mrb[0].mxu0 %v517
          %v600 = vpop.f32.mrb[0].mxu0
          %v601 = vadd.f32 0.0, %v600
          %v602 = vpop.f32.mrb[0].mxu0
          %v603 = vpop.f32.mrb[0].mxu0
          %v604 = vadd.f32 0.0, %v603
          %v605 = vpop.f32.mrb[0].mxu0
          %606 = vdwg.mxu0
          %v607 = vadd.f32 %v515, %v601
          %v608 = vadd.f32 %v516, %v604
          %609 = vst [vmem:[#allocation2] sm:$0xff] %v607
          %610 = vst [vmem:[#allocation2 + $0x8] sm:$0xff] %v608
          %p611 = scmp.eq.s32.totalorder %s47, 1
          // Predicated region
          $region53: #{tpu_custom_call.1} parent=47 // pred_check
            %p612 = pneg %p611
          $region54: #{tpu_custom_call.1} parent=47 // pred_check_branch
            %614 = sbr.rel (%p612) target = $region56
          $region55: #{tpu_custom_call.1} parent=47 // pred_region
            %v615 = vld [vmem:[#allocation2] sm:$0xff]
            %v616 = vld [vmem:[#allocation2 + $0x8] sm:$0xff]
            %617 = vst [vmem:[%s315] sm:$0xff] %v615
            %618 = vst [vmem:[%s315 + $0x8] sm:$0xff] %v616
          $region56: #{tpu_custom_call.1} parent=47 // pred_fallthru
            _
        $region48: #{tpu_custom_call.1} parent=31 // pred_fallthru
          _
        %s619 = sand.u32 %s152, 1
        %s620 = scalar_lea.sflag [#allocation10], %s619
        %s621 = sand.u32 %s152, 1
        %s622 = smul.addr %s621, 16
        %s623 = scalar_lea.vmem [#allocation14], %s622
        // Predicated region
        $region57: #{tpu_custom_call.1} parent=31 // pred_check
          %p624 = pneg %p162
        $region58: #{tpu_custom_call.1} parent=31 // pred_check_branch
          %626 = sbr.rel (%p624) target = $region60
        $region59: #{tpu_custom_call.1} parent=31 // pred_region
          %s627 = sld [smem:[#allocation6 + %s46]]
          %s628 = smul.u32 2, %s627
          %s630 = ssub.s32 256, 256
          %631 = vsyncadd %s620, %s630
          %s632 = smul.addr %s628, 128
          %s633 = scalar_lea.hbm %s7, %s632
          %s634 = sshll.u32 %s623, 4
          %s635 = int_to_ptr.vmem [resolvable:$true] %s634
          %640 = dma.vmem_to_hbm [thread:$0]  %s635, 256, %s633, %s620, 128, 128, 8
        $region60: #{tpu_custom_call.1} parent=31 // pred_fallthru
          _
      $region32: #{tpu_custom_call.1} parent=5 // pred_fallthru
        _
      %p641 = scmp.le.s32.totalorder 2, %s37
      // Predicated region
      $region61: #{tpu_custom_call.1} parent=5 // pred_check
        %p642 = pneg %p641
      $region62: #{tpu_custom_call.1} parent=5 // pred_check_branch
        %644 = sbr.rel (%p642) target = $region64
      $region63: #{tpu_custom_call.1} parent=5 // pred_region
        %s645 = ssub.s32 %s37, 2
        // Predicated region
        $region65: #{tpu_custom_call.1} parent=63 // pred_check
          %p646 = pneg %p168
        $region66: #{tpu_custom_call.1} parent=63 // pred_check_branch
          %648 = sbr.rel (%p646) target = $region68
        $region67: #{tpu_custom_call.1} parent=63 // pred_region
          %s649 = sand.u32 %s153, 1
          %s650 = scalar_lea.sflag [#allocation10], %s649
          %s651 = sand.u32 %s153, 1
          %s652 = smul.addr %s651, 16
          %s653 = scalar_lea.vmem [#allocation14], %s652
          %654 = dma.done %s650, 256
        $region68: #{tpu_custom_call.1} parent=63 // pred_fallthru
          _
      $region64: #{tpu_custom_call.1} parent=5 // pred_fallthru
        _
    $region6: #{tpu_custom_call.1} parent=1 // loop_footer
      %s41 = sadd.s32 1, %s37
    $region7: #{tpu_custom_call.1} parent=1 // loop_footer_branch
      %36 = sbr.rel target = $region3
    $region8: #{tpu_custom_call.1} parent=1 // loop_exit
      _
    %655 = vsyncpa [#allocation9], 1
    %s656 = scalar_lea.sflag [#allocation9], 1
    %657 = vsyncpa %s656, 1
    %658 = vsyncpa [#allocation12], 1
    %s659 = scalar_lea.sflag [#allocation12], 1
    %660 = vsyncpa %s659, 1
    %661 = vsyncpa [#allocation10], 1
    %s662 = scalar_lea.sflag [#allocation10], 1
    %663 = vsyncpa %s662, 1

</llo_original>
